<compile_context>
chip_gen: v7x
topology: tpu7x:2x2x1
jax: 0.10.0
libtpu: 0.0.40
codegen_flags: <defaults>
</compile_context>

<pallas_src>
from math import sqrt

import jax
import jax.numpy as jnp
from jax import lax
from jax.experimental import pallas as pl
from jax.experimental.pallas import tpu as pltpu


def _make_kernel(Ks, Aw, TA, KsIC, OCL):
    """Kernel body; all shape params are static closures."""

    def kernel(x_ref, w_ref, b_ref, o_ref):
        # x_ref : (1, Wp, TA, KsIC)  bf16, row-tap-stacked, W-major input block
        # w_ref : (Ks, KsIC, OCL)    bf16, per-column-tap weights, 4 phases on OC
        # b_ref : (1, OCL)           f32, bias tiled over the 4 phases (lane padded)
        # o_ref : (1, Aw, TA, OCL)   bf16, phase-stacked, lane-dense output block
        acc = None
        for v in range(Ks):                      # Ks (=2) contiguous column taps
            tap = x_ref[0, pl.ds(v, Aw), :, :].reshape(Aw * TA, KsIC)
            d = jnp.dot(tap, w_ref[v], preferred_element_type=jnp.float32)
            acc = d if acc is None else acc + d  # SSA accumulation (no VMEM scratch)
        o_ref[...] = (acc + b_ref[...]).reshape(1, Aw, TA, OCL).astype(o_ref.dtype)

    return kernel


def _vmem_budget_bytes():
    """Generation-aware VMEM budget: ~48 MiB on v7x (64 MiB/TC), ~96 MiB on v5e/v6e."""
    cap = 64 * 1024 * 1024
    try:
        cap = int(pltpu.get_tpu_info().vmem_capacity_bytes)
    except Exception:
        pass
    return max(32 * 1024 * 1024, min(cap * 3 // 4, 112 * 1024 * 1024))


def _pick_row_tile(A, Wp, Aw, KsIC, OCL, Ks, const_bytes, budget_bytes,
                   in_bytes=2, out_bytes=2):
    """Largest multiple-of-8 row tile whose total VMEM footprint fits the budget.

    Footprint = single-buffered constants + 2x(in + out) tiles + f32/bf16 temps.
    """
    A8 = ((A + 7) // 8) * 8
    in_row = Wp * KsIC * in_bytes
    out_row = Aw * OCL * out_bytes
    work_row = 2 * Aw * OCL * 4 + Ks * Aw * KsIC * in_bytes   # f32 dot results + tap copies
    per_row = 2 * (in_row + out_row) + work_row
    avail = budget_bytes - const_bytes
    ta = max(8, (avail // per_row) // 8 * 8)
    return int(min(ta, A8))


def fused_upsample(x_nchw, weight, bias, pad):
    """Pallas implementation of FusedUpsample.forward (conv_transpose2d, stride 2).

    x_nchw : (B, IC, H, W)  float32
    weight : (IC, OC, K, K) float32 (raw parameter, as stored by the module)
    bias   : (OC,)          float32
    pad    : int
    returns: (B, OC, (H-1)*2 + K+1 - 2*pad, (W-1)*2 + K+1 - 2*pad) float32
    """
    B, IC, H, W = x_nchw.shape
    IC_w, OC, K, _ = weight.shape
    assert IC == IC_w
    KE = K + 1
    # TODO(synk): even kernel_size (odd effective kernel) needs a different phase
    # decomposition; StyleGAN's FusedUpsample always uses kernel_size=3.
    assert KE % 2 == 0, "phase decomposition assumes odd kernel_size"
    Ks = KE // 2

    # ---- effective (smoothed) weight, exactly as the PyTorch forward -------
    multiplier = sqrt(2.0 / (IC * K * K))
    w = weight.astype(jnp.float32) * multiplier
    w = jnp.pad(w, ((0, 0), (0, 0), (1, 1), (1, 1)))
    w_eff = (w[:, :, 1:, 1:] + w[:, :, :-1, 1:]
             + w[:, :, 1:, :-1] + w[:, :, :-1, :-1]) / 4.0   # (IC, OC, KE, KE)

    # ---- phase-split weights: wk[v, u*IC+ic, (2r+c)*OC+oc]
    #                            = w_eff[ic, oc, 2*(Ks-1-u)+r, 2*(Ks-1-v)+c] ---
    wr = w_eff.reshape(IC, OC, Ks, 2, Ks, 2)        # [ic, oc, qh, r, qw, c]
    wr = jnp.flip(wr, axis=(2, 4))                  # qh -> u, qw -> v
    wk = jnp.transpose(wr, (4, 2, 0, 3, 5, 1))      # [v, u, ic, r, c, oc]
    OC4 = 4 * OC
    KsIC = Ks * IC
    wk = wk.reshape(Ks, KsIC, OC4)

    # Lane-pad the output / weight N dim to a multiple of 128 -> unmasked vst.
    OCL = max(128, -(-OC4 // 128) * 128)
    if OCL != OC4:
        wk = jnp.pad(wk, ((0, 0), (0, 0), (0, OCL - OC4)))
    wk = wk.astype(jnp.bfloat16)
    bias4 = jnp.tile(bias.astype(jnp.float32), (4,))
    bias4 = jnp.pad(bias4, (0, OCL - OC4)).reshape(1, OCL)

    # ---- row-tap-stacked, W-major input: xs[n,w,a,u*IC+ic] = xpad[n,ic,a+u,w]
    # TODO(synk): on v5e the Ks-fold tap duplication doubles input HBM traffic;
    # a halo-carrying (overlapping) BlockSpec would remove it.
    A = H + Ks - 1                                  # phase rows (per parity)
    Aw = W + Ks - 1                                 # phase cols (per parity)
    Wp = W + 2 * (Ks - 1)
    xpad = jnp.pad(x_nchw, ((0, 0), (0, 0), (Ks - 1, Ks - 1), (Ks - 1, Ks - 1)))
    xs = jnp.stack([xpad[:, :, u:u + A, :] for u in range(Ks)], axis=1)  # (B,Ks,IC,A,Wp)
    xs = jnp.transpose(xs, (0, 4, 3, 1, 2)).reshape(B, Wp, A, KsIC)
    xs = xs.astype(jnp.bfloat16)

    const_bytes = wk.size * wk.dtype.itemsize + bias4.size * 4
    budget = _vmem_budget_bytes()
    TA = _pick_row_tile(A, Wp, Aw, KsIC, OCL, Ks, const_bytes, budget)
    nb = -(-A // TA)
    # v7x has 2 TensorCores: keep the parallel grid extent >= 2 when possible.
    if B * nb < 2 and A > 8:
        TA = max(8, ((-(-A // 2) + 7) // 8) * 8)
        nb = -(-A // TA)
    A_pad = nb * TA
    if A_pad != A:
        xs = jnp.pad(xs, ((0, 0), (0, 0), (0, A_pad - A), (0, 0)))

    kernel = _make_kernel(Ks, Aw, TA, KsIC, OCL)

    flops = 2 * B * A_pad * Aw * Ks * KsIC * OCL
    bytes_accessed = (xs.size * xs.dtype.itemsize + wk.size * wk.dtype.itemsize
                      + bias4.size * 4 + B * Aw * A_pad * OCL * 2)

    def _build(single_buffer_consts):
        const_mode = (dict(pipeline_mode=pl.Buffered(1))
                      if single_buffer_consts else {})
        return pl.pallas_call(
            kernel,
            out_shape=jax.ShapeDtypeStruct((B, Aw, A_pad, OCL), jnp.bfloat16),
            grid_spec=pltpu.PrefetchScalarGridSpec(
                num_scalar_prefetch=0,
                grid=(B, nb),
                in_specs=[
                    pl.BlockSpec((1, Wp, TA, KsIC), lambda b, t: (b, 0, t, 0)),
                    pl.BlockSpec((Ks, KsIC, OCL), lambda b, t: (0, 0, 0), **const_mode),
                    pl.BlockSpec((1, OCL), lambda b, t: (0, 0), **const_mode),
                ],
                out_specs=pl.BlockSpec((1, Aw, TA, OCL), lambda b, t: (b, 0, t, 0)),
            ),
            compiler_params=pltpu.CompilerParams(
                dimension_semantics=("parallel", "parallel"),
                vmem_limit_bytes=budget,
            ),
            cost_estimate=pl.CostEstimate(
                flops=flops, transcendentals=0, bytes_accessed=bytes_accessed),
        )

    try:
        out_k = _build(True)(xs, wk, bias4)
    except Exception:
        # Fallback if this jax version rejects single-buffered constant operands.
        out_k = _build(False)(xs, wk, bias4)

    # ---- pixel-shuffle the 4 phases + return to NCHW (single transpose) ----
    # TODO(synk): if the consumer can take the phase-stacked NHWC-like layout,
    # this extra full-output read+write pass can be skipped entirely.
    out_k = out_k[:, :, :A, :OC4].reshape(B, Aw, A, 2, 2, OC)   # [n, bw, a, r, c, oc]
    full = jnp.transpose(out_k, (0, 5, 2, 3, 1, 4)).reshape(B, OC, 2 * A, 2 * Aw)
    Hf, Wf = 2 * A, 2 * Aw
    return full[:, :, pad:Hf - pad, pad:Wf - pad].astype(jnp.float32)


def _reference(x_nchw, weight, bias, pad):
    """Pure-JAX f32 reference: conv_transpose2d(stride=2) via lhs-dilated conv."""
    IC, OC, K, _ = weight.shape
    KE = K + 1
    multiplier = sqrt(2.0 / (IC * K * K))
    w = weight * multiplier
    w = jnp.pad(w, ((0, 0), (0, 0), (1, 1), (1, 1)))
    w_eff = (w[:, :, 1:, 1:] + w[:, :, :-1, 1:]
             + w[:, :, 1:, :-1] + w[:, :, :-1, :-1]) / 4.0   # (IC, OC, KE, KE)
    w_conv = jnp.flip(jnp.transpose(w_eff, (1, 0, 2, 3)), axis=(2, 3))  # (OC,IC,KE,KE)
    out = lax.conv_general_dilated(
        x_nchw, w_conv, window_strides=(1, 1),
        padding=[(KE - 1 - pad, KE - 1 - pad)] * 2,
        lhs_dilation=(2, 2), rhs_dilation=(1, 1),
        dimension_numbers=("NCHW", "OIHW", "NCHW"))
    return out + bias[None, :, None, None]


if __name__ == "__main__":
    # Small shapes consistent with the module (kernel_size=3, padding=1 as in StyleGAN).
    B, IC, OC, K, PAD = 2, 4, 8, 3, 1
    H = W = 16

    key = jax.random.PRNGKey(0)
    kx, kw, kb = jax.random.split(key, 3)
    x = jax.random.normal(kx, (B, IC, H, W), dtype=jnp.float32)
    weight = jax.random.normal(kw, (IC, OC, K, K), dtype=jnp.float32)   # ~torch.randn
    bias = 0.1 * jax.random.normal(kb, (OC,), dtype=jnp.float32)

    out = jax.block_until_ready(fused_upsample(x, weight, bias, PAD))
    ref = jax.block_until_ready(_reference(x, weight, bias, PAD))

    expected = (B, OC, (H - 1) * 2 + (K + 1) - 2 * PAD, (W - 1) * 2 + (K + 1) - 2 * PAD)
    assert out.shape == ref.shape == expected, (out.shape, ref.shape, expected)
    max_err = float(jnp.max(jnp.abs(out - ref)))
    # bf16 inputs/weights with f32 MXU accumulation -> looser tolerance than pure f32.
    assert jnp.allclose(out, ref, atol=5e-2, rtol=5e-2), max_err

    print("KERNEL_OK")
</pallas_src>

<mosaic_0001>
module attributes {stable_mosaic.version = 11 : i64} {
  func.func @kernel(%arg0: i32, %arg1: i32, %arg2: memref<1x18x24x8xbf16, #tpu.memory_space<vmem>>, %arg3: memref<2x8x128xbf16, #tpu.memory_space<vmem>>, %arg4: memref<1x128xf32, #tpu.memory_space<vmem>>, %arg5: memref<1x17x24x128xbf16, #tpu.memory_space<vmem>>) attributes {dimension_semantics = [#tpu.dimension_semantics<parallel>, #tpu.dimension_semantics<parallel>], iteration_bounds = array<i64: 2, 1>, scalar_prefetch = 0 : i64, scratch_operands = 0 : i64, tpu.core_type = #tpu.core_type<tc>, window_params = [{transform_indices = @transform_0, window_bounds = array<i64: 1, 18, 24, 8>}, {pipeline_mode = #tpu.pipeline_mode<synchronous>, transform_indices = @transform_1, window_bounds = array<i64: 2, 8, 128>}, {pipeline_mode = #tpu.pipeline_mode<synchronous>, transform_indices = @transform_2, window_bounds = array<i64: 1, 128>}, {transform_indices = @transform_3, window_bounds = array<i64: 1, 17, 24, 128>}]} {
    %c0 = arith.constant 0 : index
    %c0_0 = arith.constant 0 : index
    %c0_1 = arith.constant 0 : index
    %c0_2 = arith.constant 0 : index
    %0 = vector.load %arg2[%c0, %c0_0, %c0_1, %c0_2] : memref<1x18x24x8xbf16, #tpu.memory_space<vmem>>, vector<1x17x24x8xbf16>
    %1 = vector.shape_cast %0 : vector<1x17x24x8xbf16> to vector<17x24x8xbf16>
    %2 = vector.shape_cast %1 : vector<17x24x8xbf16> to vector<408x8xbf16>
    %c0_3 = arith.constant 0 : index
    %c0_4 = arith.constant 0 : index
    %c0_5 = arith.constant 0 : index
    %3 = vector.load %arg3[%c0_3, %c0_4, %c0_5] : memref<2x8x128xbf16, #tpu.memory_space<vmem>>, vector<1x8x128xbf16>
    %4 = vector.shape_cast %3 : vector<1x8x128xbf16> to vector<8x128xbf16>
    %cst = arith.constant dense<0.000000e+00> : vector<408x128xf32>
    %5 = tpu.matmul %2, %4, %cst {dimension_numbers = #tpu.dot_dimension_numbers<[1], [0], [0], [1], [0, 0, 1, 1], [], []>} : vector<408x8xbf16>, vector<8x128xbf16>, vector<408x128xf32> -> vector<408x128xf32>
    %c0_6 = arith.constant 0 : index
    %c1 = arith.constant 1 : index
    %c0_7 = arith.constant 0 : index
    %c0_8 = arith.constant 0 : index
    %6 = vector.load %arg2[%c0_6, %c1, %c0_7, %c0_8] : memref<1x18x24x8xbf16, #tpu.memory_space<vmem>>, vector<1x17x24x8xbf16>
    %7 = vector.shape_cast %6 : vector<1x17x24x8xbf16> to vector<17x24x8xbf16>
    %8 = vector.shape_cast %7 : vector<17x24x8xbf16> to vector<408x8xbf16>
    %c1_9 = arith.constant 1 : index
    %c0_10 = arith.constant 0 : index
    %c0_11 = arith.constant 0 : index
    %9 = vector.load %arg3[%c1_9, %c0_10, %c0_11] : memref<2x8x128xbf16, #tpu.memory_space<vmem>>, vector<1x8x128xbf16>
    %10 = vector.shape_cast %9 : vector<1x8x128xbf16> to vector<8x128xbf16>
    %cst_12 = arith.constant dense<0.000000e+00> : vector<408x128xf32>
    %11 = tpu.matmul %8, %10, %cst_12 {dimension_numbers = #tpu.dot_dimension_numbers<[1], [0], [0], [1], [0, 0, 1, 1], [], []>} : vector<408x8xbf16>, vector<8x128xbf16>, vector<408x128xf32> -> vector<408x128xf32>
    %12 = arith.addf %5, %11 : vector<408x128xf32>
    %c0_13 = arith.constant 0 : index
    %c0_14 = arith.constant 0 : index
    %13 = vector.load %arg4[%c0_13, %c0_14] : memref<1x128xf32, #tpu.memory_space<vmem>>, vector<1x128xf32>
    %14 = vector.broadcast %13 : vector<1x128xf32> to vector<408x128xf32>
    %15 = arith.addf %12, %14 : vector<408x128xf32>
    %16 = vector.shape_cast %15 : vector<408x128xf32> to vector<1x17x24x128xf32>
    %17 = arith.truncf %16 : vector<1x17x24x128xf32> to vector<1x17x24x128xbf16>
    %c0_15 = arith.constant 0 : index
    %c0_16 = arith.constant 0 : index
    %c0_17 = arith.constant 0 : index
    %c0_18 = arith.constant 0 : index
    %18 = vector.load %arg5[%c0_15, %c0_16, %c0_17, %c0_18] : memref<1x17x24x128xbf16, #tpu.memory_space<vmem>>, vector<1x17x24x128xbf16>
    tpu.vector_store %arg5[%c0_15, %c0_16, %c0_17, %c0_18], %17 {strides = array<i32>} : memref<1x17x24x128xbf16, #tpu.memory_space<vmem>>, vector<1x17x24x128xbf16>,
    return
  }
  func.func @transform_0(%arg0: i32, %arg1: i32) -> (i32, i32, i32, i32) {
    %c0_i32 = arith.constant 0 : i32
    %c0_i32_0 = arith.constant 0 : i32
    %c0_i32_1 = arith.constant 0 : i32
    return %arg0, %c0_i32, %arg1, %c0_i32_0 : i32, i32, i32, i32
  }
  func.func @transform_1(%arg0: i32, %arg1: i32) -> (i32, i32, i32) {
    %c0_i32 = arith.constant 0 : i32
    %c0_i32_0 = arith.constant 0 : i32
    %c0_i32_1 = arith.constant 0 : i32
    %c0_i32_2 = arith.constant 0 : i32
    return %c0_i32, %c0_i32_0, %c0_i32_1 : i32, i32, i32
  }
  func.func @transform_2(%arg0: i32, %arg1: i32) -> (i32, i32) {
    %c0_i32 = arith.constant 0 : i32
    %c0_i32_0 = arith.constant 0 : i32
    %c0_i32_1 = arith.constant 0 : i32
    return %c0_i32, %c0_i32_0 : i32, i32
  }
  func.func @transform_3(%arg0: i32, %arg1: i32) -> (i32, i32, i32, i32) {
    %c0_i32 = arith.constant 0 : i32
    %c0_i32_0 = arith.constant 0 : i32
    %c0_i32_1 = arith.constant 0 : i32
    return %arg0, %c0_i32, %arg1, %c0_i32_0 : i32, i32, i32, i32
  }
}

module attributes {stable_mosaic.version = 11 : i64} {
  func.func @kernel(%arg0: i32, %arg1: i32, %arg2: memref<1x18x24x8xbf16, #tpu.memory_space<vmem>>, %arg3: memref<2x8x128xbf16, #tpu.memory_space<vmem>>, %arg4: memref<1x128xf32, #tpu.memory_space<vmem>>, %arg5: memref<1x17x24x128xbf16, #tpu.memory_space<vmem>>) attributes {dimension_semantics = [#tpu.dimension_semantics<parallel>, #tpu.dimension_semantics<parallel>], iteration_bounds = array<i64: 2, 1>, scalar_prefetch = 0 : i64, scratch_operands = 0 : i64, tpu.core_type = #tpu.core_type<tc>, window_params = [{transform_indices = @transform_0, window_bounds = array<i64: 1, 18, 24, 8>}, {pipeline_mode = #tpu.pipeline_mode<synchronous>, transform_indices = @transform_1, window_bounds = array<i64: 2, 8, 128>}, {pipeline_mode = #tpu.pipeline_mode<synchronous>, transform_indices = @transform_2, window_bounds = array<i64: 1, 128>}, {transform_indices = @transform_3, window_bounds = array<i64: 1, 17, 24, 128>}]} {
    %c0 = arith.constant 0 : index
    %c0_0 = arith.constant 0 : index
    %c0_1 = arith.constant 0 : index
    %c0_2 = arith.constant 0 : index
    %0 = vector.load %arg2[%c0, %c0_0, %c0_1, %c0_2] : memref<1x18x24x8xbf16, #tpu.memory_space<vmem>>, vector<1x17x24x8xbf16>
    %1 = vector.shape_cast %0 : vector<1x17x24x8xbf16> to vector<17x24x8xbf16>
    %2 = vector.shape_cast %1 : vector<17x24x8xbf16> to vector<408x8xbf16>
    %c0_3 = arith.constant 0 : index
    %c0_4 = arith.constant 0 : index
    %c0_5 = arith.constant 0 : index
    %3 = vector.load %arg3[%c0_3, %c0_4, %c0_5] : memref<2x8x128xbf16, #tpu.memory_space<vmem>>, vector<1x8x128xbf16>
    %4 = vector.shape_cast %3 : vector<1x8x128xbf16> to vector<8x128xbf16>
    %cst = arith.constant dense<0.000000e+00> : vector<408x128xf32>
    %5 = tpu.matmul %2, %4, %cst {dimension_numbers = #tpu.dot_dimension_numbers<[1], [0], [0], [1], [0, 0, 1, 1], [], []>} : vector<408x8xbf16>, vector<8x128xbf16>, vector<408x128xf32> -> vector<408x128xf32>
    %c0_6 = arith.constant 0 : index
    %c1 = arith.constant 1 : index
    %c0_7 = arith.constant 0 : index
    %c0_8 = arith.constant 0 : index
    %6 = vector.load %arg2[%c0_6, %c1, %c0_7, %c0_8] : memref<1x18x24x8xbf16, #tpu.memory_space<vmem>>, vector<1x17x24x8xbf16>
    %7 = vector.shape_cast %6 : vector<1x17x24x8xbf16> to vector<17x24x8xbf16>
    %8 = vector.shape_cast %7 : vector<17x24x8xbf16> to vector<408x8xbf16>
    %c1_9 = arith.constant 1 : index
    %c0_10 = arith.constant 0 : index
    %c0_11 = arith.constant 0 : index
    %9 = vector.load %arg3[%c1_9, %c0_10, %c0_11] : memref<2x8x128xbf16, #tpu.memory_space<vmem>>, vector<1x8x128xbf16>
    %10 = vector.shape_cast %9 : vector<1x8x128xbf16> to vector<8x128xbf16>
    %cst_12 = arith.constant dense<0.000000e+00> : vector<408x128xf32>
    %11 = tpu.matmul %8, %10, %cst_12 {dimension_numbers = #tpu.dot_dimension_numbers<[1], [0], [0], [1], [0, 0, 1, 1], [], []>} : vector<408x8xbf16>, vector<8x128xbf16>, vector<408x128xf32> -> vector<408x128xf32>
    %12 = arith.addf %5, %11 : vector<408x128xf32>
    %c0_13 = arith.constant 0 : index
    %c0_14 = arith.constant 0 : index
    %13 = vector.load %arg4[%c0_13, %c0_14] : memref<1x128xf32, #tpu.memory_space<vmem>>, vector<1x128xf32>
    %14 = vector.broadcast %13 : vector<1x128xf32> to vector<408x128xf32>
    %15 = arith.addf %12, %14 : vector<408x128xf32>
    %16 = vector.shape_cast %15 : vector<408x128xf32> to vector<1x17x24x128xf32>
    %17 = arith.truncf %16 : vector<1x17x24x128xf32> to vector<1x17x24x128xbf16>
    %c0_15 = arith.constant 0 : index
    %c0_16 = arith.constant 0 : index
    %c0_17 = arith.constant 0 : index
    %c0_18 = arith.constant 0 : index
    %18 = vector.load %arg5[%c0_15, %c0_16, %c0_17, %c0_18] : memref<1x17x24x128xbf16, #tpu.memory_space<vmem>>, vector<1x17x24x128xbf16>
    tpu.vector_store %arg5[%c0_15, %c0_16, %c0_17, %c0_18], %17 {strides = array<i32>} : memref<1x17x24x128xbf16, #tpu.memory_space<vmem>>, vector<1x17x24x128xbf16>,
    return
  }
  func.func @transform_0(%arg0: i32, %arg1: i32) -> (i32, i32, i32, i32) {
    %c0_i32 = arith.constant 0 : i32
    %c0_i32_0 = arith.constant 0 : i32
    %c0_i32_1 = arith.constant 0 : i32
    return %arg0, %c0_i32, %arg1, %c0_i32_0 : i32, i32, i32, i32
  }
  func.func @transform_1(%arg0: i32, %arg1: i32) -> (i32, i32, i32) {
    %c0_i32 = arith.constant 0 : i32
    %c0_i32_0 = arith.constant 0 : i32
    %c0_i32_1 = arith.constant 0 : i32
    %c0_i32_2 = arith.constant 0 : i32
    return %c0_i32, %c0_i32_0, %c0_i32_1 : i32, i32, i32
  }
  func.func @transform_2(%arg0: i32, %arg1: i32) -> (i32, i32) {
    %c0_i32 = arith.constant 0 : i32
    %c0_i32_0 = arith.constant 0 : i32
    %c0_i32_1 = arith.constant 0 : i32
    return %c0_i32, %c0_i32_0 : i32, i32
  }
  func.func @transform_3(%arg0: i32, %arg1: i32) -> (i32, i32, i32, i32) {
    %c0_i32 = arith.constant 0 : i32
    %c0_i32_0 = arith.constant 0 : i32
    %c0_i32_1 = arith.constant 0 : i32
    return %arg0, %c0_i32, %arg1, %c0_i32_0 : i32, i32, i32, i32
  }
}

</mosaic_0001>

<llo_original>
// kernel: tpu_custom_call.1
$region0: #{tpu_custom_call.1}
  #allocation0 [shape = 'u32[]', space=smem, size = 0x4, offset = 0x4, fixed_abs, tag = 'smem constant byte address 0x4 - core index']
  #allocation1 [shape = 'u32[144,128]{1,0:T(1,128)}', space=vmem, size = 0x12000, scoped, tag = 'internal scratch']
  %s0 = inlined_call_operand.vmem [shape: bf16[2,18,24,8], index: 0, kind: input, shape index: {}]
  %s1 = inlined_call_operand.vmem [shape: bf16[2,8,128], index: 1, kind: input, shape index: {}]
  %s2 = inlined_call_operand.vmem [shape: f32[1,128], index: 2, kind: input, shape index: {}]
  %s3 = inlined_call_operand.hbm [shape: bf16[2,17,24,128], index: 3, kind: output, shape index: {}]
  %s4 = sld [smem:[#allocation0]]
  $region45: #{tpu_custom_call.1} parent=0
    _
  %s6 = ssub.s32 1, %s4
  %s7 = scalar_select 0, %s6, %s4
  $region1: #{tpu_custom_call.1} parent=0
    #allocation2 [shape = 'u8[208896]{0}', space=vmem, size = 0x33000, scoped, tag = 'output window, operand 0']
    #allocation3 [shape = 's32[2]{0}', space=sflag, size = 0x8, scoped, tag = 'scoped memory for tpu_custom_call.1']
    %8 = vsyncpa [#allocation3], 0
    %s9 = scalar_lea.sflag [#allocation3], 1
    %10 = vsyncpa %s9, 0
    loop: start=0, step=1, limit=4
    $region2: #{tpu_custom_call.1} parent=1 // loop_pre_header
      _
    $region3: #{tpu_custom_call.1} parent=1 // loop_header
      %s12 = sphi 0, %s16
      %p13 = scmp.ge.s32.totalorder %s12, 4
      %s19 = sphi 0, %s31
      %s20 = sphi 0, %s27
      %s21 = sphi 0, %s19
      %s22 = sphi 0, %s20
      %s23 = sphi 0, %s21
      %s24 = sphi 0, %s22
      %s36 = sphi 0, %s38
      %s39 = sphi 0, %s36
      %s40 = sphi 0, %s39
      %s56 = sphi 0, %s40
      %s60 = sphi 0, %s60
      %s62 = sphi 0, %s60
      %s63 = sphi 0, %s62
      %s77 = sphi 0, %s63
      %s81 = sphi 0, %s81
      %s83 = sphi 0, %s81
      %s84 = sphi 0, %s83
      %s98 = sphi 0, %s84
      %s106 = sphi 0, %s108
      %s109 = sphi 0, %s106
      %s110 = sphi 0, %s109
      %s126 = sphi 0, %s110
    $region4: #{tpu_custom_call.1} parent=1 // loop_header_branch
      %15 = sbr.rel (%p13) target = $region8
    $region5: #{tpu_custom_call.1} parent=1 // loop_body
      %s17 = ssub.s32 %s12, 1
      %s18 = ssub.s32 %s12, 2
      %s25 = sadd.s32 1, %s20
      %p26 = scmp.ge.s32.totalorder %s25, 1
      %s27 = scalar_select %p26, 0, %s25
      %s28 = sadd.s32 1, %s19
      %s29 = scalar_select %p26, %s28, %s19
      %p30 = scmp.ge.s32.totalorder %s29, 2
      %s31 = scalar_select %p30, 0, %s29
      %s32 = ssub.s32 %s19, %s31
      %s33 = ssub.s32 %s20, %s27
      %s34 = sor.u32 %s32, %s33
      %p35 = scmp.eq.s32.totalorder %s34, 0
      %s37 = sadd.s32 %s36, 1
      %s38 = scalar_select %p35, %s36, %s37
      %p41 = pneg %p35
      %p42 = scmp.eq.s32.totalorder %s12, 1
      %p43 = por %p41, %p42
      %p44 = scmp.ne.s32.totalorder %s36, %s39
      %p45 = scmp.eq.s32.totalorder %s12, 0
      %p46 = por %p44, %p45
      %p47 = scmp.ne.s32.totalorder %s36, %s39
      %p48 = scmp.eq.s32.totalorder %s17, 1
      %p49 = por %p47, %p48
      %p50 = scmp.ne.s32.totalorder %s39, %s40
      %p51 = scmp.eq.s32.totalorder %s17, 0
      %p52 = por %p50, %p51
      %p53 = scmp.ne.s32.totalorder %s39, %s40
      %p54 = scmp.eq.s32.totalorder %s18, 1
      %p55 = por %p53, %p54
      %p57 = scmp.ne.s32.totalorder %s40, %s56
      %p58 = scmp.eq.s32.totalorder %s18, 0
      %p59 = por %p57, %p58
      %s61 = sadd.s32 %s60, 1
      %p64 = scmp.eq.s32.totalorder %s12, 1
      %p65 = scmp.ne.s32.totalorder %s60, %s62
      %p66 = scmp.eq.s32.totalorder %s12, 0
      %p67 = por %p65, %p66
      %p68 = scmp.ne.s32.totalorder %s60, %s62
      %p69 = scmp.eq.s32.totalorder %s17, 1
      %p70 = por %p68, %p69
      %p71 = scmp.ne.s32.totalorder %s62, %s63
      %p72 = scmp.eq.s32.totalorder %s17, 0
      %p73 = por %p71, %p72
      %p74 = scmp.ne.s32.totalorder %s62, %s63
      %p75 = scmp.eq.s32.totalorder %s18, 1
      %p76 = por %p74, %p75
      %p78 = scmp.ne.s32.totalorder %s63, %s77
      %p79 = scmp.eq.s32.totalorder %s18, 0
      %p80 = por %p78, %p79
      %s82 = sadd.s32 %s81, 1
      %p85 = scmp.eq.s32.totalorder %s12, 1
      %p86 = scmp.ne.s32.totalorder %s81, %s83
      %p87 = scmp.eq.s32.totalorder %s12, 0
      %p88 = por %p86, %p87
      %p89 = scmp.ne.s32.totalorder %s81, %s83
      %p90 = scmp.eq.s32.totalorder %s17, 1
      %p91 = por %p89, %p90
      %p92 = scmp.ne.s32.totalorder %s83, %s84
      %p93 = scmp.eq.s32.totalorder %s17, 0
      %p94 = por %p92, %p93
      %p95 = scmp.ne.s32.totalorder %s83, %s84
      %p96 = scmp.eq.s32.totalorder %s18, 1
      %p97 = por %p95, %p96
      %p99 = scmp.ne.s32.totalorder %s84, %s98
      %p100 = scmp.eq.s32.totalorder %s18, 0
      %p101 = por %p99, %p100
      %s102 = ssub.s32 %s19, %s31
      %s103 = ssub.s32 %s20, %s27
      %s104 = sor.u32 %s102, %s103
      %p105 = scmp.eq.s32.totalorder %s104, 0
      %s107 = sadd.s32 %s106, 1
      %s108 = scalar_select %p105, %s106, %s107
      %p111 = pneg %p105
      %p112 = scmp.eq.s32.totalorder %s12, 1
      %p113 = por %p111, %p112
      %p114 = scmp.ne.s32.totalorder %s106, %s109
      %p115 = scmp.eq.s32.totalorder %s12, 0
      %p116 = por %p114, %p115
      %p117 = scmp.ne.s32.totalorder %s106, %s109
      %p118 = scmp.eq.s32.totalorder %s17, 1
      %p119 = por %p117, %p118
      %p120 = scmp.ne.s32.totalorder %s109, %s110
      %p121 = scmp.eq.s32.totalorder %s17, 0
      %p122 = por %p120, %p121
      %p123 = scmp.ne.s32.totalorder %s109, %s110
      %p124 = scmp.eq.s32.totalorder %s18, 1
      %p125 = por %p123, %p124
      %p127 = scmp.ne.s32.totalorder %s110, %s126
      %p128 = scmp.eq.s32.totalorder %s18, 0
      %p129 = por %p127, %p128
      %p130 = scmp.le.s32.totalorder 1, %s12
      %p131 = scmp.lt.s32.totalorder %s12, 3
      %p132 = pnand %p130, %p131
      %p133 = pneg %p132
      // Predicated region
      $region9: #{tpu_custom_call.1} parent=5 // pred_check
        _
      $region10: #{tpu_custom_call.1} parent=5 // pred_check_branch
        %135 = sbr.rel (%p132) target = $region12
      $region11: #{tpu_custom_call.1} parent=5 // pred_region
        %s136 = ssub.s32 %s12, 1
        // Predicated region
        $region13: #{tpu_custom_call.1} parent=11 // pred_check
          %p137 = pneg %p73
        $region14: #{tpu_custom_call.1} parent=11 // pred_check_branch
          %139 = sbr.rel (%p137) target = $region16
        $region15: #{tpu_custom_call.1} parent=11 // pred_region
          _
        $region16: #{tpu_custom_call.1} parent=11 // pred_fallthru
          _
        // Predicated region
        $region17: #{tpu_custom_call.1} parent=11 // pred_check
          %p140 = pneg %p94
        $region18: #{tpu_custom_call.1} parent=11 // pred_check_branch
          %142 = sbr.rel (%p140) target = $region20
        $region19: #{tpu_custom_call.1} parent=11 // pred_region
          _
        $region20: #{tpu_custom_call.1} parent=11 // pred_fallthru
          _
      $region12: #{tpu_custom_call.1} parent=5 // pred_fallthru
        _
      %p143 = scmp.lt.s32.totalorder %s12, 2
      // Predicated region
      $region21: #{tpu_custom_call.1} parent=5 // pred_check
        %p144 = pneg %p143
      $region22: #{tpu_custom_call.1} parent=5 // pred_check_branch
        %146 = sbr.rel (%p144) target = $region24
      $region23: #{tpu_custom_call.1} parent=5 // pred_region
        // Predicated region
        $region25: #{tpu_custom_call.1} parent=23 // pred_check
          %p147 = pneg %p46
        $region26: #{tpu_custom_call.1} parent=23 // pred_check_branch
          %149 = sbr.rel (%p147) target = $region28
        $region27: #{tpu_custom_call.1} parent=23 // pred_region
          %s150 = smul.u32 3, %s20
          %p151 = scmp.lt.s32.totalorder %s19, 1
          %s152 = scalar_select %p151, %s19, 1
          %p153 = scmp.lt.s32.totalorder %s150, 2
          %s154 = scalar_select %p153, %s150, 2
          %s155 = smul.addr %s152, 54
          %s156 = sadd.s32 %s154, %s155
          %s157 = smul.addr %s156, 4
          %s158 = scalar_lea.vmem %s0, %s157
          %s159 = smul.u32 3, %s20
        $region28: #{tpu_custom_call.1} parent=23 // pred_fallthru
          _
      $region24: #{tpu_custom_call.1} parent=5 // pred_fallthru
        _
      %p160 = scmp.le.s32.totalorder 1, %s12
      %p161 = scmp.lt.s32.totalorder %s12, 3
      %p162 = pnand %p160, %p161
      %p163 = pneg %p162
      // Predicated region
      $region29: #{tpu_custom_call.1} parent=5 // pred_check
        _
      $region30: #{tpu_custom_call.1} parent=5 // pred_check_branch
        %165 = sbr.rel (%p162) target = $region32
      $region31: #{tpu_custom_call.1} parent=5 // pred_region
        %s166 = ssub.s32 %s12, 1
        %s167 = smul.u32 3, %s22
        %p168 = scmp.lt.s32.totalorder %s21, 1
        %s169 = scalar_select %p168, %s21, 1
        %p170 = scmp.lt.s32.totalorder %s167, 2
        %s171 = scalar_select %p170, %s167, 2
        %s172 = smul.addr %s169, 54
        %s173 = sadd.s32 %s171, %s172
        %s174 = smul.addr %s173, 4
        %s175 = scalar_lea.vmem %s0, %s174
        %p176 = pneg %p52
        %p177 = pneg %p49
        %p178 = pneg %p73
        %p179 = pneg %p70
        %p180 = pneg %p94
        %p181 = pneg %p91
        %p182 = pneg %p122
        %p183 = pneg %p119
        %s184 = sand.u32 %s109, 1
        %s185 = scalar_lea.sflag [#allocation3], %s184
        %s186 = sand.u32 %s109, 1
        %s187 = smul.addr %s186, 204
        %s188 = scalar_lea.vmem [#allocation2], %s187
        %s189 = smul.u32 3, %s22
        %p190 = scmp.lt.s32.totalorder %s21, 1
        %s191 = scalar_select %p190, %s21, 1
        %p192 = scmp.lt.s32.totalorder %s189, 2
        %s193 = scalar_select %p192, %s189, 2
        %s194 = smul.addr %s191, 54
        %s195 = sadd.s32 %s193, %s194
        %s196 = smul.addr %s195, 4
        %s197 = scalar_lea.vmem %s0, %s196
        %s198 = smul.u32 3, %s22
        %s199 = smul.u32 3, %s22
        %v201 = vld [vmem:[%s197] sm:$0xf]
        %v202 = vld [vmem:[%s197 + $0x4] sm:$0xf]
        %v203 = vld [vmem:[%s197 + $0x8] sm:$0xf]
        %v204 = vld [vmem:[%s197 + $0xc] sm:$0xf]
        %v205 = vld [vmem:[%s197 + $0x10] sm:$0xf]
        %v206 = vld [vmem:[%s197 + $0x14] sm:$0xf]
        %v207 = vld [vmem:[%s197 + $0x18] sm:$0xf]
        %v208 = vld [vmem:[%s197 + $0x1c] sm:$0xf]
        %v209 = vld [vmem:[%s197 + $0x20] sm:$0xf]
        %v210 = vld [vmem:[%s197 + $0x24] sm:$0xf]
        %v211 = vld [vmem:[%s197 + $0x28] sm:$0xf]
        %v212 = vld [vmem:[%s197 + $0x2c] sm:$0xf]
        %v213 = vld [vmem:[%s197 + $0x30] sm:$0xf]
        %v214 = vld [vmem:[%s197 + $0x34] sm:$0xf]
        %v215 = vld [vmem:[%s197 + $0x38] sm:$0xf]
        %v216 = vld [vmem:[%s197 + $0x3c] sm:$0xf]
        %v217 = vld [vmem:[%s197 + $0x40] sm:$0xf]
        %v218 = vld [vmem:[%s197 + $0x44] sm:$0xf]
        %v219 = vld [vmem:[%s197 + $0x48] sm:$0xf]
        %v220 = vld [vmem:[%s197 + $0x4c] sm:$0xf]
        %v221 = vld [vmem:[%s197 + $0x50] sm:$0xf]
        %v222 = vld [vmem:[%s197 + $0x54] sm:$0xf]
        %v223 = vld [vmem:[%s197 + $0x58] sm:$0xf]
        %v224 = vld [vmem:[%s197 + $0x5c] sm:$0xf]
        %v225 = vld [vmem:[%s197 + $0x60] sm:$0xf]
        %v226 = vld [vmem:[%s197 + $0x64] sm:$0xf]
        %v227 = vld [vmem:[%s197 + $0x68] sm:$0xf]
        %v228 = vld [vmem:[%s197 + $0x6c] sm:$0xf]
        %v229 = vld [vmem:[%s197 + $0x70] sm:$0xf]
        %v230 = vld [vmem:[%s197 + $0x74] sm:$0xf]
        %v231 = vld [vmem:[%s197 + $0x78] sm:$0xf]
        %v232 = vld [vmem:[%s197 + $0x7c] sm:$0xf]
        %v233 = vld [vmem:[%s197 + $0x80] sm:$0xf]
        %v234 = vld [vmem:[%s197 + $0x84] sm:$0xf]
        %v235 = vld [vmem:[%s197 + $0x88] sm:$0xf]
        %v236 = vld [vmem:[%s197 + $0x8c] sm:$0xf]
        %v237 = vld [vmem:[%s197 + $0x90] sm:$0xf]
        %v238 = vld [vmem:[%s197 + $0x94] sm:$0xf]
        %v239 = vld [vmem:[%s197 + $0x98] sm:$0xf]
        %v240 = vld [vmem:[%s197 + $0x9c] sm:$0xf]
        %v241 = vld [vmem:[%s197 + $0xa0] sm:$0xf]
        %v242 = vld [vmem:[%s197 + $0xa4] sm:$0xf]
        %v243 = vld [vmem:[%s197 + $0xa8] sm:$0xf]
        %v244 = vld [vmem:[%s197 + $0xac] sm:$0xf]
        %v245 = vld [vmem:[%s197 + $0xb0] sm:$0xf]
        %v246 = vld [vmem:[%s197 + $0xb4] sm:$0xf]
        %v247 = vld [vmem:[%s197 + $0xb8] sm:$0xf]
        %v248 = vld [vmem:[%s197 + $0xbc] sm:$0xf]
        %v249 = vld [vmem:[%s197 + $0xc0] sm:$0xf]
        %v250 = vld [vmem:[%s197 + $0xc4] sm:$0xf]
        %v251 = vld [vmem:[%s197 + $0xc8] sm:$0xf]
        %v252 = vld [vmem:[%s1] sm:$0xf]
        %s253 = scalar_lea.vmem %s197, 12
        %v254 = vld [vmem:[%s253] sm:$0xf]
        %v255 = vld [vmem:[%s253 + $0x4] sm:$0xf]
        %v256 = vld [vmem:[%s253 + $0x8] sm:$0xf]
        %v257 = vld [vmem:[%s253 + $0xc] sm:$0xf]
        %v258 = vld [vmem:[%s253 + $0x10] sm:$0xf]
        %v259 = vld [vmem:[%s253 + $0x14] sm:$0xf]
        %v260 = vld [vmem:[%s253 + $0x18] sm:$0xf]
        %v261 = vld [vmem:[%s253 + $0x1c] sm:$0xf]
        %v262 = vld [vmem:[%s253 + $0x20] sm:$0xf]
        %v263 = vld [vmem:[%s253 + $0x24] sm:$0xf]
        %v264 = vld [vmem:[%s253 + $0x28] sm:$0xf]
        %v265 = vld [vmem:[%s253 + $0x2c] sm:$0xf]
        %v266 = vld [vmem:[%s253 + $0x30] sm:$0xf]
        %v267 = vld [vmem:[%s253 + $0x34] sm:$0xf]
        %v268 = vld [vmem:[%s253 + $0x38] sm:$0xf]
        %v269 = vld [vmem:[%s253 + $0x3c] sm:$0xf]
        %v270 = vld [vmem:[%s253 + $0x40] sm:$0xf]
        %v271 = vld [vmem:[%s253 + $0x44] sm:$0xf]
        %v272 = vld [vmem:[%s253 + $0x48] sm:$0xf]
        %v273 = vld [vmem:[%s253 + $0x4c] sm:$0xf]
        %v274 = vld [vmem:[%s253 + $0x50] sm:$0xf]
        %v275 = vld [vmem:[%s253 + $0x54] sm:$0xf]
        %v276 = vld [vmem:[%s253 + $0x58] sm:$0xf]
        %v277 = vld [vmem:[%s253 + $0x5c] sm:$0xf]
        %v278 = vld [vmem:[%s253 + $0x60] sm:$0xf]
        %v279 = vld [vmem:[%s253 + $0x64] sm:$0xf]
        %v280 = vld [vmem:[%s253 + $0x68] sm:$0xf]
        %v281 = vld [vmem:[%s253 + $0x6c] sm:$0xf]
        %v282 = vld [vmem:[%s253 + $0x70] sm:$0xf]
        %v283 = vld [vmem:[%s253 + $0x74] sm:$0xf]
        %v284 = vld [vmem:[%s253 + $0x78] sm:$0xf]
        %v285 = vld [vmem:[%s253 + $0x7c] sm:$0xf]
        %v286 = vld [vmem:[%s253 + $0x80] sm:$0xf]
        %v287 = vld [vmem:[%s253 + $0x84] sm:$0xf]
        %v288 = vld [vmem:[%s253 + $0x88] sm:$0xf]
        %v289 = vld [vmem:[%s253 + $0x8c] sm:$0xf]
        %v290 = vld [vmem:[%s253 + $0x90] sm:$0xf]
        %v291 = vld [vmem:[%s253 + $0x94] sm:$0xf]
        %v292 = vld [vmem:[%s253 + $0x98] sm:$0xf]
        %v293 = vld [vmem:[%s253 + $0x9c] sm:$0xf]
        %v294 = vld [vmem:[%s253 + $0xa0] sm:$0xf]
        %v295 = vld [vmem:[%s253 + $0xa4] sm:$0xf]
        %v296 = vld [vmem:[%s253 + $0xa8] sm:$0xf]
        %v297 = vld [vmem:[%s253 + $0xac] sm:$0xf]
        %v298 = vld [vmem:[%s253 + $0xb0] sm:$0xf]
        %v299 = vld [vmem:[%s253 + $0xb4] sm:$0xf]
        %v300 = vld [vmem:[%s253 + $0xb8] sm:$0xf]
        %v301 = vld [vmem:[%s253 + $0xbc] sm:$0xf]
        %v302 = vld [vmem:[%s253 + $0xc0] sm:$0xf]
        %v303 = vld [vmem:[%s253 + $0xc4] sm:$0xf]
        %v304 = vld [vmem:[%s253 + $0xc8] sm:$0xf]
        %s305 = scalar_lea.vmem %s1, 4
        %v306 = vld [vmem:[%s305] sm:$0xf]
        %v358 = vunpack.c.l.b16 %v254
        %v359 = vunpack.c.l.b16 %v255
        %v360 = vunpack.c.l.b16 %v256
        %v361 = vunpack.c.l.b16 %v257
        %v362 = vunpack.c.l.b16 %v258
        %v363 = vunpack.c.l.b16 %v259
        %v364 = vunpack.c.l.b16 %v260
        %v365 = vunpack.c.l.b16 %v261
        %v366 = vunpack.c.l.b16 %v262
        %v367 = vunpack.c.l.b16 %v263
        %v368 = vunpack.c.l.b16 %v264
        %v369 = vunpack.c.l.b16 %v265
        %v370 = vunpack.c.l.b16 %v266
        %v371 = vunpack.c.l.b16 %v267
        %v372 = vunpack.c.l.b16 %v268
        %v373 = vunpack.c.l.b16 %v269
        %v374 = vunpack.c.l.b16 %v270
        %v375 = vunpack.c.l.b16 %v271
        %v376 = vunpack.c.l.b16 %v272
        %v377 = vunpack.c.l.b16 %v273
        %v378 = vunpack.c.l.b16 %v274
        %v379 = vunpack.c.l.b16 %v275
        %v380 = vunpack.c.l.b16 %v276
        %v381 = vunpack.c.l.b16 %v277
        %v382 = vunpack.c.l.b16 %v278
        %v383 = vunpack.c.l.b16 %v279
        %v384 = vunpack.c.l.b16 %v280
        %v385 = vunpack.c.l.b16 %v281
        %v386 = vunpack.c.l.b16 %v282
        %v387 = vunpack.c.l.b16 %v283
        %v388 = vunpack.c.l.b16 %v284
        %v389 = vunpack.c.l.b16 %v285
        %v390 = vunpack.c.l.b16 %v286
        %v391 = vunpack.c.l.b16 %v287
        %v392 = vunpack.c.l.b16 %v288
        %v393 = vunpack.c.l.b16 %v289
        %v394 = vunpack.c.l.b16 %v290
        %v395 = vunpack.c.l.b16 %v291
        %v396 = vunpack.c.l.b16 %v292
        %v397 = vunpack.c.l.b16 %v293
        %v398 = vunpack.c.l.b16 %v294
        %v399 = vunpack.c.l.b16 %v295
        %v400 = vunpack.c.l.b16 %v296
        %v401 = vunpack.c.l.b16 %v297
        %v402 = vunpack.c.l.b16 %v298
        %v403 = vunpack.c.l.b16 %v299
        %v404 = vunpack.c.l.b16 %v300
        %v405 = vunpack.c.l.b16 %v301
        %v406 = vunpack.c.l.b16 %v302
        %v407 = vunpack.c.l.b16 %v303
        %v408 = vunpack.c.l.b16 %v304
        %v409 = vpack.c.b16 %v359, %v358
        %v410 = vpack.c.b16 %v361, %v360
        %v411 = vpack.c.b16 %v363, %v362
        %v412 = vpack.c.b16 %v365, %v364
        %v413 = vpack.c.b16 %v367, %v366
        %v414 = vpack.c.b16 %v369, %v368
        %v415 = vpack.c.b16 %v371, %v370
        %v416 = vpack.c.b16 %v373, %v372
        %v417 = vpack.c.b16 %v375, %v374
        %v418 = vpack.c.b16 %v377, %v376
        %v419 = vpack.c.b16 %v379, %v378
        %v420 = vpack.c.b16 %v381, %v380
        %v421 = vpack.c.b16 %v383, %v382
        %v422 = vpack.c.b16 %v385, %v384
        %v423 = vpack.c.b16 %v387, %v386
        %v424 = vpack.c.b16 %v389, %v388
        %v425 = vpack.c.b16 %v391, %v390
        %v426 = vpack.c.b16 %v393, %v392
        %v427 = vpack.c.b16 %v395, %v394
        %v428 = vpack.c.b16 %v397, %v396
        %v429 = vpack.c.b16 %v399, %v398
        %v430 = vpack.c.b16 %v401, %v400
        %v431 = vpack.c.b16 %v403, %v402
        %v432 = vpack.c.b16 %v405, %v404
        %v433 = vpack.c.b16 %v407, %v406
        %v434 = vpack.c.b16 %v408, %v408
        %vm435 = vcmask 64512
        %v437 = vsel %vm435, %v409, 0
        %v440 = vsel %vm435, %v410, 0
        %v443 = vsel %vm435, %v411, 0
        %v446 = vsel %vm435, %v412, 0
        %v449 = vsel %vm435, %v413, 0
        %v452 = vsel %vm435, %v414, 0
        %v455 = vsel %vm435, %v415, 0
        %v458 = vsel %vm435, %v416, 0
        %v461 = vsel %vm435, %v417, 0
        %v464 = vsel %vm435, %v418, 0
        %v467 = vsel %vm435, %v419, 0
        %v470 = vsel %vm435, %v420, 0
        %v473 = vsel %vm435, %v421, 0
        %v476 = vsel %vm435, %v422, 0
        %v479 = vsel %vm435, %v423, 0
        %v482 = vsel %vm435, %v424, 0
        %v485 = vsel %vm435, %v425, 0
        %v488 = vsel %vm435, %v426, 0
        %v491 = vsel %vm435, %v427, 0
        %v494 = vsel %vm435, %v428, 0
        %v497 = vsel %vm435, %v429, 0
        %v500 = vsel %vm435, %v430, 0
        %v503 = vsel %vm435, %v431, 0
        %v506 = vsel %vm435, %v432, 0
        %v509 = vsel %vm435, %v433, 0
        %v512 = vsel %vm435, %v434, 0
        %vm514 = vcmask 1043456
        %v516 = vsel %vm514, %v306, 0
        %518 = vmatprep.subr.bf16.mxu0 0
        %519 = vmatpush1.bf16.msra.mxu0 %v516
        %520 = vmatprep.subr.bf16.mxu0 0
        %521 = vmatpush1.bf16.msra.mxu0 0
        %522 = vmatprep.subr.bf16.mxu0 0
        %523 = vmatpush1.bf16.msra.mxu0 0
        %524 = vmatprep.subr.bf16.mxu0 0
        %525 = vmatpush1.bf16.msra.mxu0 0
        %526 = vmatprep.subr.bf16.mxu0 0
        %527 = vmatpush1.bf16.msra.mxu0 0
        %528 = vmatprep.subr.bf16.mxu0 0
        %529 = vmatpush1.bf16.msra.mxu0 0
        %530 = vmatprep.subr.bf16.mxu0 0
        %531 = vmatpush1.bf16.msra.mxu0 0
        %532 = vmatprep.subr.bf16.mxu0 0
        %533 = vmatpush1.bf16.msra.mxu0 0
        %534 = vmatprep.subr.bf16.mxu0 0
        %535 = vmatpush1.bf16.msra.mxu0 0
        %536 = vmatprep.subr.bf16.mxu0 0
        %537 = vmatpush1.bf16.msra.mxu0 0
        %538 = vmatprep.subr.bf16.mxu0 0
        %539 = vmatpush1.bf16.msra.mxu0 0
        %540 = vmatprep.subr.bf16.mxu0 0
        %541 = vmatpush1.bf16.msra.mxu0 0
        %542 = vmatprep.subr.bf16.mxu0 0
        %543 = vmatpush1.bf16.msra.mxu0 0
        %544 = vmatprep.subr.bf16.mxu0 0
        %545 = vmatpush1.bf16.msra.mxu0 0
        %546 = vmatprep.subr.bf16.mxu0 0
        %547 = vmatpush1.bf16.msra.mxu0 0
        %548 = vmatprep.subr.bf16.mxu0 0
        %549 = vmatpush1.bf16.msra.mxu0 0
        %550 = vmatprep.mubr.bf16.mxu0 0
        %551 = vmatmul.mubr.bf16.gmra.mrb[0].mxu0 %v437
        %v552 = vpop.f32.mrb[0].mxu0
        %v553 = vadd.f32 0.0, %v552
        %v554 = vpop.f32.mrb[0].mxu0
        %v555 = vpop.f32.mrb[0].mxu0
        %v556 = vadd.f32 0.0, %v555
        %v557 = vpop.f32.mrb[0].mxu0
        %558 = vmatprep.mubr.bf16.mxu0 0
        %559 = vmatmul.mubr.bf16.gmra.mrb[0].mxu0 %v440
        %v560 = vpop.f32.mrb[0].mxu0
        %v561 = vadd.f32 0.0, %v560
        %v562 = vpop.f32.mrb[0].mxu0
        %v563 = vpop.f32.mrb[0].mxu0
        %v564 = vadd.f32 0.0, %v563
        %v565 = vpop.f32.mrb[0].mxu0
        %566 = vmatprep.mubr.bf16.mxu0 0
        %567 = vmatmul.mubr.bf16.gmra.mrb[0].mxu0 %v443
        %v568 = vpop.f32.mrb[0].mxu0
        %v569 = vadd.f32 0.0, %v568
        %v570 = vpop.f32.mrb[0].mxu0
        %v571 = vpop.f32.mrb[0].mxu0
        %v572 = vadd.f32 0.0, %v571
        %v573 = vpop.f32.mrb[0].mxu0
        %574 = vmatprep.mubr.bf16.mxu0 0
        %575 = vmatmul.mubr.bf16.gmra.mrb[0].mxu0 %v446
        %v576 = vpop.f32.mrb[0].mxu0
        %v577 = vadd.f32 0.0, %v576
        %v578 = vpop.f32.mrb[0].mxu0
        %v579 = vpop.f32.mrb[0].mxu0
        %v580 = vadd.f32 0.0, %v579
        %v581 = vpop.f32.mrb[0].mxu0
        %582 = vmatprep.mubr.bf16.mxu0 0
        %583 = vmatmul.mubr.bf16.gmra.mrb[0].mxu0 %v449
        %v584 = vpop.f32.mrb[0].mxu0
        %v585 = vadd.f32 0.0, %v584
        %v586 = vpop.f32.mrb[0].mxu0
        %v587 = vpop.f32.mrb[0].mxu0
        %v588 = vadd.f32 0.0, %v587
        %v589 = vpop.f32.mrb[0].mxu0
        %590 = vmatprep.mubr.bf16.mxu0 0
        %591 = vmatmul.mubr.bf16.gmra.mrb[0].mxu0 %v452
        %v592 = vpop.f32.mrb[0].mxu0
        %v593 = vadd.f32 0.0, %v592
        %v594 = vpop.f32.mrb[0].mxu0
        %v595 = vpop.f32.mrb[0].mxu0
        %v596 = vadd.f32 0.0, %v595
        %v597 = vpop.f32.mrb[0].mxu0
        %598 = vmatprep.mubr.bf16.mxu0 0
        %599 = vmatmul.mubr.bf16.gmra.mrb[0].mxu0 %v455
        %v600 = vpop.f32.mrb[0].mxu0
        %v601 = vadd.f32 0.0, %v600
        %v602 = vpop.f32.mrb[0].mxu0
        %v603 = vpop.f32.mrb[0].mxu0
        %v604 = vadd.f32 0.0, %v603
        %v605 = vpop.f32.mrb[0].mxu0
        %606 = vmatprep.mubr.bf16.mxu0 0
        %607 = vmatmul.mubr.bf16.gmra.mrb[0].mxu0 %v458
        %v608 = vpop.f32.mrb[0].mxu0
        %v609 = vadd.f32 0.0, %v608
        %v610 = vpop.f32.mrb[0].mxu0
        %v611 = vpop.f32.mrb[0].mxu0
        %v612 = vadd.f32 0.0, %v611
        %v613 = vpop.f32.mrb[0].mxu0
        %614 = vmatprep.mubr.bf16.mxu0 0
        %615 = vmatmul.mubr.bf16.gmra.mrb[0].mxu0 %v461
        %v616 = vpop.f32.mrb[0].mxu0
        %v617 = vadd.f32 0.0, %v616
        %v618 = vpop.f32.mrb[0].mxu0
        %v619 = vpop.f32.mrb[0].mxu0
        %v620 = vadd.f32 0.0, %v619
        %v621 = vpop.f32.mrb[0].mxu0
        %622 = vmatprep.mubr.bf16.mxu0 0
        %623 = vmatmul.mubr.bf16.gmra.mrb[0].mxu0 %v464
        %v624 = vpop.f32.mrb[0].mxu0
        %v625 = vadd.f32 0.0, %v624
        %v626 = vpop.f32.mrb[0].mxu0
        %v627 = vpop.f32.mrb[0].mxu0
        %v628 = vadd.f32 0.0, %v627
        %v629 = vpop.f32.mrb[0].mxu0
        %630 = vmatprep.mubr.bf16.mxu0 0
        %631 = vmatmul.mubr.bf16.gmra.mrb[0].mxu0 %v467
        %v632 = vpop.f32.mrb[0].mxu0
        %v633 = vadd.f32 0.0, %v632
        %v634 = vpop.f32.mrb[0].mxu0
        %v635 = vpop.f32.mrb[0].mxu0
        %v636 = vadd.f32 0.0, %v635
        %v637 = vpop.f32.mrb[0].mxu0
        %638 = vmatprep.mubr.bf16.mxu0 0
        %639 = vmatmul.mubr.bf16.gmra.mrb[0].mxu0 %v470
        %v640 = vpop.f32.mrb[0].mxu0
        %v641 = vadd.f32 0.0, %v640
        %v642 = vpop.f32.mrb[0].mxu0
        %v643 = vpop.f32.mrb[0].mxu0
        %v644 = vadd.f32 0.0, %v643
        %v645 = vpop.f32.mrb[0].mxu0
        %646 = vmatprep.mubr.bf16.mxu0 0
        %647 = vmatmul.mubr.bf16.gmra.mrb[0].mxu0 %v473
        %v648 = vpop.f32.mrb[0].mxu0
        %v649 = vadd.f32 0.0, %v648
        %v650 = vpop.f32.mrb[0].mxu0
        %v651 = vpop.f32.mrb[0].mxu0
        %v652 = vadd.f32 0.0, %v651
        %v653 = vpop.f32.mrb[0].mxu0
        %654 = vmatprep.mubr.bf16.mxu0 0
        %655 = vmatmul.mubr.bf16.gmra.mrb[0].mxu0 %v476
        %v656 = vpop.f32.mrb[0].mxu0
        %v657 = vadd.f32 0.0, %v656
        %v658 = vpop.f32.mrb[0].mxu0
        %v659 = vpop.f32.mrb[0].mxu0
        %v660 = vadd.f32 0.0, %v659
        %v661 = vpop.f32.mrb[0].mxu0
        %662 = vmatprep.mubr.bf16.mxu0 0
        %663 = vmatmul.mubr.bf16.gmra.mrb[0].mxu0 %v479
        %v664 = vpop.f32.mrb[0].mxu0
        %v665 = vadd.f32 0.0, %v664
        %v666 = vpop.f32.mrb[0].mxu0
        %v667 = vpop.f32.mrb[0].mxu0
        %v668 = vadd.f32 0.0, %v667
        %v669 = vpop.f32.mrb[0].mxu0
        %670 = vmatprep.mubr.bf16.mxu0 0
        %671 = vmatmul.mubr.bf16.gmra.mrb[0].mxu0 %v482
        %v672 = vpop.f32.mrb[0].mxu0
        %v673 = vadd.f32 0.0, %v672
        %v674 = vpop.f32.mrb[0].mxu0
        %v675 = vpop.f32.mrb[0].mxu0
        %v676 = vadd.f32 0.0, %v675
        %v677 = vpop.f32.mrb[0].mxu0
        %678 = vmatprep.mubr.bf16.mxu0 0
        %679 = vmatmul.mubr.bf16.gmra.mrb[0].mxu0 %v485
        %v680 = vpop.f32.mrb[0].mxu0
        %v681 = vadd.f32 0.0, %v680
        %v682 = vpop.f32.mrb[0].mxu0
        %v683 = vpop.f32.mrb[0].mxu0
        %v684 = vadd.f32 0.0, %v683
        %v685 = vpop.f32.mrb[0].mxu0
        %686 = vmatprep.mubr.bf16.mxu0 0
        %687 = vmatmul.mubr.bf16.gmra.mrb[0].mxu0 %v488
        %v688 = vpop.f32.mrb[0].mxu0
        %v689 = vadd.f32 0.0, %v688
        %v690 = vpop.f32.mrb[0].mxu0
        %v691 = vpop.f32.mrb[0].mxu0
        %v692 = vadd.f32 0.0, %v691
        %v693 = vpop.f32.mrb[0].mxu0
        %694 = vmatprep.mubr.bf16.mxu0 0
        %695 = vmatmul.mubr.bf16.gmra.mrb[0].mxu0 %v491
        %v696 = vpop.f32.mrb[0].mxu0
        %v697 = vadd.f32 0.0, %v696
        %v698 = vpop.f32.mrb[0].mxu0
        %v699 = vpop.f32.mrb[0].mxu0
        %v700 = vadd.f32 0.0, %v699
        %v701 = vpop.f32.mrb[0].mxu0
        %702 = vmatprep.mubr.bf16.mxu0 0
        %703 = vmatmul.mubr.bf16.gmra.mrb[0].mxu0 %v494
        %v704 = vpop.f32.mrb[0].mxu0
        %v705 = vadd.f32 0.0, %v704
        %v706 = vpop.f32.mrb[0].mxu0
        %v707 = vpop.f32.mrb[0].mxu0
        %v708 = vadd.f32 0.0, %v707
        %v709 = vpop.f32.mrb[0].mxu0
        %710 = vmatprep.mubr.bf16.mxu0 0
        %711 = vmatmul.mubr.bf16.gmra.mrb[0].mxu0 %v497
        %v712 = vpop.f32.mrb[0].mxu0
        %v713 = vadd.f32 0.0, %v712
        %v714 = vpop.f32.mrb[0].mxu0
        %v715 = vpop.f32.mrb[0].mxu0
        %v716 = vadd.f32 0.0, %v715
        %v717 = vpop.f32.mrb[0].mxu0
        %718 = vmatprep.mubr.bf16.mxu0 0
        %719 = vmatmul.mubr.bf16.gmra.mrb[0].mxu0 %v500
        %v720 = vpop.f32.mrb[0].mxu0
        %v721 = vadd.f32 0.0, %v720
        %v722 = vpop.f32.mrb[0].mxu0
        %v723 = vpop.f32.mrb[0].mxu0
        %v724 = vadd.f32 0.0, %v723
        %v725 = vpop.f32.mrb[0].mxu0
        %726 = vmatprep.mubr.bf16.mxu0 0
        %727 = vmatmul.mubr.bf16.gmra.mrb[0].mxu0 %v503
        %v728 = vpop.f32.mrb[0].mxu0
        %v729 = vadd.f32 0.0, %v728
        %v730 = vpop.f32.mrb[0].mxu0
        %v731 = vpop.f32.mrb[0].mxu0
        %v732 = vadd.f32 0.0, %v731
        %v733 = vpop.f32.mrb[0].mxu0
        %734 = vmatprep.mubr.bf16.mxu0 0
        %735 = vmatmul.mubr.bf16.gmra.mrb[0].mxu0 %v506
        %v736 = vpop.f32.mrb[0].mxu0
        %v737 = vadd.f32 0.0, %v736
        %v738 = vpop.f32.mrb[0].mxu0
        %v739 = vpop.f32.mrb[0].mxu0
        %v740 = vadd.f32 0.0, %v739
        %v741 = vpop.f32.mrb[0].mxu0
        %742 = vmatprep.mubr.bf16.mxu0 0
        %743 = vmatmul.mubr.bf16.gmra.mrb[0].mxu0 %v509
        %v744 = vpop.f32.mrb[0].mxu0
        %v745 = vadd.f32 0.0, %v744
        %v746 = vpop.f32.mrb[0].mxu0
        %v747 = vpop.f32.mrb[0].mxu0
        %v748 = vadd.f32 0.0, %v747
        %v749 = vpop.f32.mrb[0].mxu0
        %750 = vmatprep.mubr.bf16.mxu0 0
        %751 = vmatmul.mubr.bf16.gmra.mrb[0].mxu0 %v512
        %v752 = vpop.f32.mrb[0].mxu0
        %v753 = vadd.f32 0.0, %v752
        %v754 = vpop.f32.mrb[0].mxu0
        %v755 = vpop.f32.mrb[0].mxu0
        %v756 = vpop.f32.mrb[0].mxu0
        %757 = vdwg.mxu0
        %v809 = vunpack.c.l.b16 %v201
        %v810 = vunpack.c.l.b16 %v202
        %v811 = vunpack.c.l.b16 %v203
        %v812 = vunpack.c.l.b16 %v204
        %v813 = vunpack.c.l.b16 %v205
        %v814 = vunpack.c.l.b16 %v206
        %v815 = vunpack.c.l.b16 %v207
        %v816 = vunpack.c.l.b16 %v208
        %v817 = vunpack.c.l.b16 %v209
        %v818 = vunpack.c.l.b16 %v210
        %v819 = vunpack.c.l.b16 %v211
        %v820 = vunpack.c.l.b16 %v212
        %v821 = vunpack.c.l.b16 %v213
        %v822 = vunpack.c.l.b16 %v214
        %v823 = vunpack.c.l.b16 %v215
        %v824 = vunpack.c.l.b16 %v216
        %v825 = vunpack.c.l.b16 %v217
        %v826 = vunpack.c.l.b16 %v218
        %v827 = vunpack.c.l.b16 %v219
        %v828 = vunpack.c.l.b16 %v220
        %v829 = vunpack.c.l.b16 %v221
        %v830 = vunpack.c.l.b16 %v222
        %v831 = vunpack.c.l.b16 %v223
        %v832 = vunpack.c.l.b16 %v224
        %v833 = vunpack.c.l.b16 %v225
        %v834 = vunpack.c.l.b16 %v226
        %v835 = vunpack.c.l.b16 %v227
        %v836 = vunpack.c.l.b16 %v228
        %v837 = vunpack.c.l.b16 %v229
        %v838 = vunpack.c.l.b16 %v230
        %v839 = vunpack.c.l.b16 %v231
        %v840 = vunpack.c.l.b16 %v232
        %v841 = vunpack.c.l.b16 %v233
        %v842 = vunpack.c.l.b16 %v234
        %v843 = vunpack.c.l.b16 %v235
        %v844 = vunpack.c.l.b16 %v236
        %v845 = vunpack.c.l.b16 %v237
        %v846 = vunpack.c.l.b16 %v238
        %v847 = vunpack.c.l.b16 %v239
        %v848 = vunpack.c.l.b16 %v240
        %v849 = vunpack.c.l.b16 %v241
        %v850 = vunpack.c.l.b16 %v242
        %v851 = vunpack.c.l.b16 %v243
        %v852 = vunpack.c.l.b16 %v244
        %v853 = vunpack.c.l.b16 %v245
        %v854 = vunpack.c.l.b16 %v246
        %v855 = vunpack.c.l.b16 %v247
        %v856 = vunpack.c.l.b16 %v248
        %v857 = vunpack.c.l.b16 %v249
        %v858 = vunpack.c.l.b16 %v250
        %v859 = vunpack.c.l.b16 %v251
        %v860 = vpack.c.b16 %v810, %v809
        %v861 = vpack.c.b16 %v812, %v811
        %v862 = vpack.c.b16 %v814, %v813
        %v863 = vpack.c.b16 %v816, %v815
        %v864 = vpack.c.b16 %v818, %v817
        %v865 = vpack.c.b16 %v820, %v819
        %v866 = vpack.c.b16 %v822, %v821
        %v867 = vpack.c.b16 %v824, %v823
        %v868 = vpack.c.b16 %v826, %v825
        %v869 = vpack.c.b16 %v828, %v827
        %v870 = vpack.c.b16 %v830, %v829
        %v871 = vpack.c.b16 %v832, %v831
        %v872 = vpack.c.b16 %v834, %v833
        %v873 = vpack.c.b16 %v836, %v835
        %v874 = vpack.c.b16 %v838, %v837
        %v875 = vpack.c.b16 %v840, %v839
        %v876 = vpack.c.b16 %v842, %v841
        %v877 = vpack.c.b16 %v844, %v843
        %v878 = vpack.c.b16 %v846, %v845
        %v879 = vpack.c.b16 %v848, %v847
        %v880 = vpack.c.b16 %v850, %v849
        %v881 = vpack.c.b16 %v852, %v851
        %v882 = vpack.c.b16 %v854, %v853
        %v883 = vpack.c.b16 %v856, %v855
        %v884 = vpack.c.b16 %v858, %v857
        %v885 = vpack.c.b16 %v859, %v859
        %v887 = vsel %vm435, %v860, 0
        %v890 = vsel %vm435, %v861, 0
        %v893 = vsel %vm435, %v862, 0
        %v896 = vsel %vm435, %v863, 0
        %v899 = vsel %vm435, %v864, 0
        %v902 = vsel %vm435, %v865, 0
        %v905 = vsel %vm435, %v866, 0
        %v908 = vsel %vm435, %v867, 0
        %v911 = vsel %vm435, %v868, 0
        %v914 = vsel %vm435, %v869, 0
        %v917 = vsel %vm435, %v870, 0
        %v920 = vsel %vm435, %v871, 0
        %v923 = vsel %vm435, %v872, 0
        %v926 = vsel %vm435, %v873, 0
        %v929 = vsel %vm435, %v874, 0
        %v932 = vsel %vm435, %v875, 0
        %v935 = vsel %vm435, %v876, 0
        %v938 = vsel %vm435, %v877, 0
        %v941 = vsel %vm435, %v878, 0
        %v944 = vsel %vm435, %v879, 0
        %v947 = vsel %vm435, %v880, 0
        %v950 = vsel %vm435, %v881, 0
        %v953 = vsel %vm435, %v882, 0
        %v956 = vsel %vm435, %v883, 0
        %v959 = vsel %vm435, %v884, 0
        %v962 = vsel %vm435, %v885, 0
        %v965 = vsel %vm514, %v252, 0
        %967 = vmatprep.subr.bf16.mxu0 0
        %968 = vmatpush1.bf16.msra.mxu0 %v965
        %969 = vmatprep.subr.bf16.mxu0 0
        %970 = vmatpush1.bf16.msra.mxu0 0
        %971 = vmatprep.subr.bf16.mxu0 0
        %972 = vmatpush1.bf16.msra.mxu0 0
        %973 = vmatprep.subr.bf16.mxu0 0
        %974 = vmatpush1.bf16.msra.mxu0 0
        %975 = vmatprep.subr.bf16.mxu0 0
        %976 = vmatpush1.bf16.msra.mxu0 0
        %977 = vmatprep.subr.bf16.mxu0 0
        %978 = vmatpush1.bf16.msra.mxu0 0
        %979 = vmatprep.subr.bf16.mxu0 0
        %980 = vmatpush1.bf16.msra.mxu0 0
        %981 = vmatprep.subr.bf16.mxu0 0
        %982 = vmatpush1.bf16.msra.mxu0 0
        %983 = vmatprep.subr.bf16.mxu0 0
        %984 = vmatpush1.bf16.msra.mxu0 0
        %985 = vmatprep.subr.bf16.mxu0 0
        %986 = vmatpush1.bf16.msra.mxu0 0
        %987 = vmatprep.subr.bf16.mxu0 0
        %988 = vmatpush1.bf16.msra.mxu0 0
        %989 = vmatprep.subr.bf16.mxu0 0
        %990 = vmatpush1.bf16.msra.mxu0 0
        %991 = vmatprep.subr.bf16.mxu0 0
        %992 = vmatpush1.bf16.msra.mxu0 0
        %993 = vmatprep.subr.bf16.mxu0 0
        %994 = vmatpush1.bf16.msra.mxu0 0
        %995 = vmatprep.subr.bf16.mxu0 0
        %996 = vmatpush1.bf16.msra.mxu0 0
        %997 = vmatprep.subr.bf16.mxu0 0
        %998 = vmatpush1.bf16.msra.mxu0 0
        %999 = vmatprep.mubr.bf16.mxu0 0
        %1000 = vmatmul.mubr.bf16.gmra.mrb[0].mxu0 %v887
        %v1001 = vpop.f32.mrb[0].mxu0
        %v1002 = vadd.f32 %v553, %v1001
        %v1003 = vpop.f32.mrb[0].mxu0
        %v1004 = vpop.f32.mrb[0].mxu0
        %v1005 = vadd.f32 %v556, %v1004
        %v1006 = vpop.f32.mrb[0].mxu0
        %1007 = vmatprep.mubr.bf16.mxu0 0
        %1008 = vmatmul.mubr.bf16.gmra.mrb[0].mxu0 %v890
        %v1009 = vpop.f32.mrb[0].mxu0
        %v1010 = vadd.f32 %v561, %v1009
        %v1011 = vpop.f32.mrb[0].mxu0
        %v1012 = vpop.f32.mrb[0].mxu0
        %v1013 = vadd.f32 %v564, %v1012
        %v1014 = vpop.f32.mrb[0].mxu0
        %1015 = vmatprep.mubr.bf16.mxu0 0
        %1016 = vmatmul.mubr.bf16.gmra.mrb[0].mxu0 %v893
        %v1017 = vpop.f32.mrb[0].mxu0
        %v1018 = vadd.f32 %v569, %v1017
        %v1019 = vpop.f32.mrb[0].mxu0
        %v1020 = vpop.f32.mrb[0].mxu0
        %v1021 = vadd.f32 %v572, %v1020
        %v1022 = vpop.f32.mrb[0].mxu0
        %1023 = vmatprep.mubr.bf16.mxu0 0
        %1024 = vmatmul.mubr.bf16.gmra.mrb[0].mxu0 %v896
        %v1025 = vpop.f32.mrb[0].mxu0
        %v1026 = vadd.f32 %v577, %v1025
        %v1027 = vpop.f32.mrb[0].mxu0
        %v1028 = vpop.f32.mrb[0].mxu0
        %v1029 = vadd.f32 %v580, %v1028
        %v1030 = vpop.f32.mrb[0].mxu0
        %1031 = vmatprep.mubr.bf16.mxu0 0
        %1032 = vmatmul.mubr.bf16.gmra.mrb[0].mxu0 %v899
        %v1033 = vpop.f32.mrb[0].mxu0
        %v1034 = vadd.f32 %v585, %v1033
        %v1035 = vpop.f32.mrb[0].mxu0
        %v1036 = vpop.f32.mrb[0].mxu0
        %v1037 = vadd.f32 %v588, %v1036
        %v1038 = vpop.f32.mrb[0].mxu0
        %1039 = vmatprep.mubr.bf16.mxu0 0
        %1040 = vmatmul.mubr.bf16.gmra.mrb[0].mxu0 %v902
        %v1041 = vpop.f32.mrb[0].mxu0
        %v1042 = vadd.f32 %v593, %v1041
        %v1043 = vpop.f32.mrb[0].mxu0
        %v1044 = vpop.f32.mrb[0].mxu0
        %v1045 = vadd.f32 %v596, %v1044
        %v1046 = vpop.f32.mrb[0].mxu0
        %1047 = vmatprep.mubr.bf16.mxu0 0
        %1048 = vmatmul.mubr.bf16.gmra.mrb[0].mxu0 %v905
        %v1049 = vpop.f32.mrb[0].mxu0
        %v1050 = vadd.f32 %v601, %v1049
        %v1051 = vpop.f32.mrb[0].mxu0
        %v1052 = vpop.f32.mrb[0].mxu0
        %v1053 = vadd.f32 %v604, %v1052
        %v1054 = vpop.f32.mrb[0].mxu0
        %1055 = vmatprep.mubr.bf16.mxu0 0
        %1056 = vmatmul.mubr.bf16.gmra.mrb[0].mxu0 %v908
        %v1057 = vpop.f32.mrb[0].mxu0
        %v1058 = vadd.f32 %v609, %v1057
        %v1059 = vpop.f32.mrb[0].mxu0
        %v1060 = vpop.f32.mrb[0].mxu0
        %v1061 = vadd.f32 %v612, %v1060
        %v1062 = vpop.f32.mrb[0].mxu0
        %1063 = vmatprep.mubr.bf16.mxu0 0
        %1064 = vmatmul.mubr.bf16.gmra.mrb[0].mxu0 %v911
        %v1065 = vpop.f32.mrb[0].mxu0
        %v1066 = vadd.f32 %v617, %v1065
        %v1067 = vpop.f32.mrb[0].mxu0
        %v1068 = vpop.f32.mrb[0].mxu0
        %v1069 = vadd.f32 %v620, %v1068
        %v1070 = vpop.f32.mrb[0].mxu0
        %1071 = vmatprep.mubr.bf16.mxu0 0
        %1072 = vmatmul.mubr.bf16.gmra.mrb[0].mxu0 %v914
        %v1073 = vpop.f32.mrb[0].mxu0
        %v1074 = vadd.f32 %v625, %v1073
        %v1075 = vpop.f32.mrb[0].mxu0
        %v1076 = vpop.f32.mrb[0].mxu0
        %v1077 = vadd.f32 %v628, %v1076
        %v1078 = vpop.f32.mrb[0].mxu0
        %1079 = vmatprep.mubr.bf16.mxu0 0
        %1080 = vmatmul.mubr.bf16.gmra.mrb[0].mxu0 %v917
        %v1081 = vpop.f32.mrb[0].mxu0
        %v1082 = vadd.f32 %v633, %v1081
        %v1083 = vpop.f32.mrb[0].mxu0
        %v1084 = vpop.f32.mrb[0].mxu0
        %v1085 = vadd.f32 %v636, %v1084
        %v1086 = vpop.f32.mrb[0].mxu0
        %1087 = vmatprep.mubr.bf16.mxu0 0
        %1088 = vmatmul.mubr.bf16.gmra.mrb[0].mxu0 %v920
        %v1089 = vpop.f32.mrb[0].mxu0
        %v1090 = vadd.f32 %v641, %v1089
        %v1091 = vpop.f32.mrb[0].mxu0
        %v1092 = vpop.f32.mrb[0].mxu0
        %v1093 = vadd.f32 %v644, %v1092
        %v1094 = vpop.f32.mrb[0].mxu0
        %1095 = vmatprep.mubr.bf16.mxu0 0
        %1096 = vmatmul.mubr.bf16.gmra.mrb[0].mxu0 %v923
        %v1097 = vpop.f32.mrb[0].mxu0
        %v1098 = vadd.f32 %v649, %v1097
        %v1099 = vpop.f32.mrb[0].mxu0
        %v1100 = vpop.f32.mrb[0].mxu0
        %v1101 = vadd.f32 %v652, %v1100
        %v1102 = vpop.f32.mrb[0].mxu0
        %1103 = vmatprep.mubr.bf16.mxu0 0
        %1104 = vmatmul.mubr.bf16.gmra.mrb[0].mxu0 %v926
        %v1105 = vpop.f32.mrb[0].mxu0
        %v1106 = vadd.f32 %v657, %v1105
        %v1107 = vpop.f32.mrb[0].mxu0
        %v1108 = vpop.f32.mrb[0].mxu0
        %v1109 = vadd.f32 %v660, %v1108
        %v1110 = vpop.f32.mrb[0].mxu0
        %1111 = vmatprep.mubr.bf16.mxu0 0
        %1112 = vmatmul.mubr.bf16.gmra.mrb[0].mxu0 %v929
        %v1113 = vpop.f32.mrb[0].mxu0
        %v1114 = vadd.f32 %v665, %v1113
        %v1115 = vpop.f32.mrb[0].mxu0
        %v1116 = vpop.f32.mrb[0].mxu0
        %v1117 = vadd.f32 %v668, %v1116
        %v1118 = vpop.f32.mrb[0].mxu0
        %1119 = vmatprep.mubr.bf16.mxu0 0
        %1120 = vmatmul.mubr.bf16.gmra.mrb[0].mxu0 %v932
        %v1121 = vpop.f32.mrb[0].mxu0
        %v1122 = vadd.f32 %v673, %v1121
        %v1123 = vpop.f32.mrb[0].mxu0
        %v1124 = vpop.f32.mrb[0].mxu0
        %v1125 = vadd.f32 %v676, %v1124
        %v1126 = vpop.f32.mrb[0].mxu0
        %1127 = vmatprep.mubr.bf16.mxu0 0
        %1128 = vmatmul.mubr.bf16.gmra.mrb[0].mxu0 %v935
        %v1129 = vpop.f32.mrb[0].mxu0
        %v1130 = vadd.f32 %v681, %v1129
        %v1131 = vpop.f32.mrb[0].mxu0
        %v1132 = vpop.f32.mrb[0].mxu0
        %v1133 = vadd.f32 %v684, %v1132
        %v1134 = vpop.f32.mrb[0].mxu0
        %1135 = vmatprep.mubr.bf16.mxu0 0
        %1136 = vmatmul.mubr.bf16.gmra.mrb[0].mxu0 %v938
        %v1137 = vpop.f32.mrb[0].mxu0
        %v1138 = vadd.f32 %v689, %v1137
        %v1139 = vpop.f32.mrb[0].mxu0
        %v1140 = vpop.f32.mrb[0].mxu0
        %v1141 = vadd.f32 %v692, %v1140
        %v1142 = vpop.f32.mrb[0].mxu0
        %1143 = vmatprep.mubr.bf16.mxu0 0
        %1144 = vmatmul.mubr.bf16.gmra.mrb[0].mxu0 %v941
        %v1145 = vpop.f32.mrb[0].mxu0
        %v1146 = vadd.f32 %v697, %v1145
        %v1147 = vpop.f32.mrb[0].mxu0
        %v1148 = vpop.f32.mrb[0].mxu0
        %v1149 = vadd.f32 %v700, %v1148
        %v1150 = vpop.f32.mrb[0].mxu0
        %1151 = vmatprep.mubr.bf16.mxu0 0
        %1152 = vmatmul.mubr.bf16.gmra.mrb[0].mxu0 %v944
        %v1153 = vpop.f32.mrb[0].mxu0
        %v1154 = vadd.f32 %v705, %v1153
        %v1155 = vpop.f32.mrb[0].mxu0
        %v1156 = vpop.f32.mrb[0].mxu0
        %v1157 = vadd.f32 %v708, %v1156
        %v1158 = vpop.f32.mrb[0].mxu0
        %1159 = vmatprep.mubr.bf16.mxu0 0
        %1160 = vmatmul.mubr.bf16.gmra.mrb[0].mxu0 %v947
        %v1161 = vpop.f32.mrb[0].mxu0
        %v1162 = vadd.f32 %v713, %v1161
        %v1163 = vpop.f32.mrb[0].mxu0
        %v1164 = vpop.f32.mrb[0].mxu0
        %v1165 = vadd.f32 %v716, %v1164
        %v1166 = vpop.f32.mrb[0].mxu0
        %1167 = vmatprep.mubr.bf16.mxu0 0
        %1168 = vmatmul.mubr.bf16.gmra.mrb[0].mxu0 %v950
        %v1169 = vpop.f32.mrb[0].mxu0
        %v1170 = vadd.f32 %v721, %v1169
        %v1171 = vpop.f32.mrb[0].mxu0
        %v1172 = vpop.f32.mrb[0].mxu0
        %v1173 = vadd.f32 %v724, %v1172
        %v1174 = vpop.f32.mrb[0].mxu0
        %1175 = vmatprep.mubr.bf16.mxu0 0
        %1176 = vmatmul.mubr.bf16.gmra.mrb[0].mxu0 %v953
        %v1177 = vpop.f32.mrb[0].mxu0
        %v1178 = vadd.f32 %v729, %v1177
        %v1179 = vpop.f32.mrb[0].mxu0
        %v1180 = vpop.f32.mrb[0].mxu0
        %v1181 = vadd.f32 %v732, %v1180
        %v1182 = vpop.f32.mrb[0].mxu0
        %1183 = vmatprep.mubr.bf16.mxu0 0
        %1184 = vmatmul.mubr.bf16.gmra.mrb[0].mxu0 %v956
        %v1185 = vpop.f32.mrb[0].mxu0
        %v1186 = vadd.f32 %v737, %v1185
        %v1187 = vpop.f32.mrb[0].mxu0
        %v1188 = vpop.f32.mrb[0].mxu0
        %v1189 = vadd.f32 %v740, %v1188
        %v1190 = vpop.f32.mrb[0].mxu0
        %1191 = vmatprep.mubr.bf16.mxu0 0
        %1192 = vmatmul.mubr.bf16.gmra.mrb[0].mxu0 %v959
        %v1193 = vpop.f32.mrb[0].mxu0
        %v1194 = vadd.f32 %v745, %v1193
        %v1195 = vpop.f32.mrb[0].mxu0
        %v1196 = vpop.f32.mrb[0].mxu0
        %v1197 = vadd.f32 %v748, %v1196
        %v1198 = vpop.f32.mrb[0].mxu0
        %1199 = vmatprep.mubr.bf16.mxu0 0
        %1200 = vmatmul.mubr.bf16.gmra.mrb[0].mxu0 %v962
        %v1201 = vpop.f32.mrb[0].mxu0
        %v1202 = vadd.f32 %v753, %v1201
        %v1203 = vpop.f32.mrb[0].mxu0
        %v1204 = vpop.f32.mrb[0].mxu0
        %v1205 = vpop.f32.mrb[0].mxu0
        %1206 = vdwg.mxu0
        %v1207 = vld [vmem:[%s2] sm:$0x1]
        %v1209 = vlaneseq
        %v1210 = vshrl.u32 %v1209, 7
        %v1211 = vsub.s32 0, %v1210
        %v1212 = vrot.slane %v1207, %v1211
        %v1214 = vadd.f32 %v1002, %v1212
        %v1215 = vadd.f32 %v1005, %v1212
        %v1216 = vadd.f32 %v1010, %v1212
        %v1217 = vadd.f32 %v1013, %v1212
        %v1218 = vadd.f32 %v1018, %v1212
        %v1219 = vadd.f32 %v1021, %v1212
        %v1220 = vadd.f32 %v1026, %v1212
        %v1221 = vadd.f32 %v1029, %v1212
        %v1222 = vadd.f32 %v1034, %v1212
        %v1223 = vadd.f32 %v1037, %v1212
        %v1224 = vadd.f32 %v1042, %v1212
        %v1225 = vadd.f32 %v1045, %v1212
        %v1226 = vadd.f32 %v1050, %v1212
        %v1227 = vadd.f32 %v1053, %v1212
        %v1228 = vadd.f32 %v1058, %v1212
        %v1229 = vadd.f32 %v1061, %v1212
        %v1230 = vadd.f32 %v1066, %v1212
        %v1231 = vadd.f32 %v1069, %v1212
        %v1232 = vadd.f32 %v1074, %v1212
        %v1233 = vadd.f32 %v1077, %v1212
        %v1234 = vadd.f32 %v1082, %v1212
        %v1235 = vadd.f32 %v1085, %v1212
        %v1236 = vadd.f32 %v1090, %v1212
        %v1237 = vadd.f32 %v1093, %v1212
        %v1238 = vadd.f32 %v1098, %v1212
        %v1239 = vadd.f32 %v1101, %v1212
        %v1240 = vadd.f32 %v1106, %v1212
        %v1241 = vadd.f32 %v1109, %v1212
        %v1242 = vadd.f32 %v1114, %v1212
        %v1243 = vadd.f32 %v1117, %v1212
        %v1244 = vadd.f32 %v1122, %v1212
        %v1245 = vadd.f32 %v1125, %v1212
        %v1246 = vadd.f32 %v1130, %v1212
        %v1247 = vadd.f32 %v1133, %v1212
        %v1248 = vadd.f32 %v1138, %v1212
        %v1249 = vadd.f32 %v1141, %v1212
        %v1250 = vadd.f32 %v1146, %v1212
        %v1251 = vadd.f32 %v1149, %v1212
        %v1252 = vadd.f32 %v1154, %v1212
        %v1253 = vadd.f32 %v1157, %v1212
        %v1254 = vadd.f32 %v1162, %v1212
        %v1255 = vadd.f32 %v1165, %v1212
        %v1256 = vadd.f32 %v1170, %v1212
        %v1257 = vadd.f32 %v1173, %v1212
        %v1258 = vadd.f32 %v1178, %v1212
        %v1259 = vadd.f32 %v1181, %v1212
        %v1260 = vadd.f32 %v1186, %v1212
        %v1261 = vadd.f32 %v1189, %v1212
        %v1262 = vadd.f32 %v1194, %v1212
        %v1263 = vadd.f32 %v1197, %v1212
        %v1264 = vadd.f32 %v1202, %v1212
        %v1265 = vpack.c.bf16 %v1215, %v1214
        %v1266 = vpack.c.bf16 %v1216, %v1216
        %v1267 = vpack.c.bf16 %v1218, %v1217
        %v1268 = vpack.c.bf16 %v1219, %v1219
        %v1269 = vpack.c.bf16 %v1221, %v1220
        %v1270 = vpack.c.bf16 %v1222, %v1222
        %v1271 = vpack.c.bf16 %v1224, %v1223
        %v1272 = vpack.c.bf16 %v1225, %v1225
        %v1273 = vpack.c.bf16 %v1227, %v1226
        %v1274 = vpack.c.bf16 %v1228, %v1228
        %v1275 = vpack.c.bf16 %v1230, %v1229
        %v1276 = vpack.c.bf16 %v1231, %v1231
        %v1277 = vpack.c.bf16 %v1233, %v1232
        %v1278 = vpack.c.bf16 %v1234, %v1234
        %v1279 = vpack.c.bf16 %v1236, %v1235
        %v1280 = vpack.c.bf16 %v1237, %v1237
        %v1281 = vpack.c.bf16 %v1239, %v1238
        %v1282 = vpack.c.bf16 %v1240, %v1240
        %v1283 = vpack.c.bf16 %v1242, %v1241
        %v1284 = vpack.c.bf16 %v1243, %v1243
        %v1285 = vpack.c.bf16 %v1245, %v1244
        %v1286 = vpack.c.bf16 %v1246, %v1246
        %v1287 = vpack.c.bf16 %v1248, %v1247
        %v1288 = vpack.c.bf16 %v1249, %v1249
        %v1289 = vpack.c.bf16 %v1251, %v1250
        %v1290 = vpack.c.bf16 %v1252, %v1252
        %v1291 = vpack.c.bf16 %v1254, %v1253
        %v1292 = vpack.c.bf16 %v1255, %v1255
        %v1293 = vpack.c.bf16 %v1257, %v1256
        %v1294 = vpack.c.bf16 %v1258, %v1258
        %v1295 = vpack.c.bf16 %v1260, %v1259
        %v1296 = vpack.c.bf16 %v1261, %v1261
        %v1297 = vpack.c.bf16 %v1263, %v1262
        %v1298 = vpack.c.bf16 %v1264, %v1264
        %v1333 = vunpack.c.l.b16 %v1265
        %v1334 = vunpack.c.h.b16 %v1265
        %v1335 = vunpack.c.l.b16 %v1266
        %v1336 = vunpack.c.l.b16 %v1267
        %v1337 = vunpack.c.h.b16 %v1267
        %v1338 = vunpack.c.l.b16 %v1268
        %v1339 = vunpack.c.l.b16 %v1269
        %v1340 = vunpack.c.h.b16 %v1269
        %v1341 = vunpack.c.l.b16 %v1270
        %v1342 = vunpack.c.l.b16 %v1271
        %v1343 = vunpack.c.h.b16 %v1271
        %v1344 = vunpack.c.l.b16 %v1272
        %v1345 = vunpack.c.l.b16 %v1273
        %v1346 = vunpack.c.h.b16 %v1273
        %v1347 = vunpack.c.l.b16 %v1274
        %v1348 = vunpack.c.l.b16 %v1275
        %v1349 = vunpack.c.h.b16 %v1275
        %v1350 = vunpack.c.l.b16 %v1276
        %v1351 = vunpack.c.l.b16 %v1277
        %v1352 = vunpack.c.h.b16 %v1277
        %v1353 = vunpack.c.l.b16 %v1278
        %v1354 = vunpack.c.l.b16 %v1279
        %v1355 = vunpack.c.h.b16 %v1279
        %v1356 = vunpack.c.l.b16 %v1280
        %v1357 = vunpack.c.l.b16 %v1281
        %v1358 = vunpack.c.h.b16 %v1281
        %v1359 = vunpack.c.l.b16 %v1282
        %v1360 = vunpack.c.l.b16 %v1283
        %v1361 = vunpack.c.h.b16 %v1283
        %v1362 = vunpack.c.l.b16 %v1284
        %v1363 = vunpack.c.l.b16 %v1285
        %v1364 = vunpack.c.h.b16 %v1285
        %v1365 = vunpack.c.l.b16 %v1286
        %v1366 = vunpack.c.l.b16 %v1287
        %v1367 = vunpack.c.h.b16 %v1287
        %v1368 = vunpack.c.l.b16 %v1288
        %v1369 = vunpack.c.l.b16 %v1289
        %v1370 = vunpack.c.h.b16 %v1289
        %v1371 = vunpack.c.l.b16 %v1290
        %v1372 = vunpack.c.l.b16 %v1291
        %v1373 = vunpack.c.h.b16 %v1291
        %v1374 = vunpack.c.l.b16 %v1292
        %v1375 = vunpack.c.l.b16 %v1293
        %v1376 = vunpack.c.h.b16 %v1293
        %v1377 = vunpack.c.l.b16 %v1294
        %v1378 = vunpack.c.l.b16 %v1295
        %v1379 = vunpack.c.h.b16 %v1295
        %v1380 = vunpack.c.l.b16 %v1296
        %v1381 = vunpack.c.l.b16 %v1297
        %v1382 = vunpack.c.h.b16 %v1297
        %v1383 = vunpack.c.l.b16 %v1298
        %v1384 = vpack.c.b16 %v1333, %v1333
        %v1385 = vpack.c.b16 %v1334, %v1334
        %v1386 = vpack.c.b16 %v1335, %v1335
        %v1387 = vpack.c.b16 %v1336, %v1336
        %v1388 = vpack.c.b16 %v1337, %v1337
        %v1389 = vpack.c.b16 %v1338, %v1338
        %v1390 = vpack.c.b16 %v1339, %v1339
        %v1391 = vpack.c.b16 %v1340, %v1340
        %v1392 = vpack.c.b16 %v1341, %v1341
        %v1393 = vpack.c.b16 %v1342, %v1342
        %v1394 = vpack.c.b16 %v1343, %v1343
        %v1395 = vpack.c.b16 %v1344, %v1344
        %v1396 = vpack.c.b16 %v1345, %v1345
        %v1397 = vpack.c.b16 %v1346, %v1346
        %v1398 = vpack.c.b16 %v1347, %v1347
        %v1399 = vpack.c.b16 %v1348, %v1348
        %v1400 = vpack.c.b16 %v1349, %v1349
        %v1401 = vpack.c.b16 %v1350, %v1350
        %v1402 = vpack.c.b16 %v1351, %v1351
        %v1403 = vpack.c.b16 %v1352, %v1352
        %v1404 = vpack.c.b16 %v1353, %v1353
        %v1405 = vpack.c.b16 %v1354, %v1354
        %v1406 = vpack.c.b16 %v1355, %v1355
        %v1407 = vpack.c.b16 %v1356, %v1356
        %v1408 = vpack.c.b16 %v1357, %v1357
        %v1409 = vpack.c.b16 %v1358, %v1358
        %v1410 = vpack.c.b16 %v1359, %v1359
        %v1411 = vpack.c.b16 %v1360, %v1360
        %v1412 = vpack.c.b16 %v1361, %v1361
        %v1413 = vpack.c.b16 %v1362, %v1362
        %v1414 = vpack.c.b16 %v1363, %v1363
        %v1415 = vpack.c.b16 %v1364, %v1364
        %v1416 = vpack.c.b16 %v1365, %v1365
        %v1417 = vpack.c.b16 %v1366, %v1366
        %v1418 = vpack.c.b16 %v1367, %v1367
        %v1419 = vpack.c.b16 %v1368, %v1368
        %v1420 = vpack.c.b16 %v1369, %v1369
        %v1421 = vpack.c.b16 %v1370, %v1370
        %v1422 = vpack.c.b16 %v1371, %v1371
        %v1423 = vpack.c.b16 %v1372, %v1372
        %v1424 = vpack.c.b16 %v1373, %v1373
        %v1425 = vpack.c.b16 %v1374, %v1374
        %v1426 = vpack.c.b16 %v1375, %v1375
        %v1427 = vpack.c.b16 %v1376, %v1376
        %v1428 = vpack.c.b16 %v1377, %v1377
        %v1429 = vpack.c.b16 %v1378, %v1378
        %v1430 = vpack.c.b16 %v1379, %v1379
        %v1431 = vpack.c.b16 %v1380, %v1380
        %v1432 = vpack.c.b16 %v1381, %v1381
        %v1433 = vpack.c.b16 %v1382, %v1382
        %v1434 = vpack.c.b16 %v1383, %v1383
        %1486 = vst [vmem:[%s188] sm:$0xf] %v1384
        %1487 = vst [vmem:[%s188 + $0x4] sm:$0xf] %v1385
        %1488 = vst [vmem:[%s188 + $0x8] sm:$0xf] %v1386
        %1489 = vst [vmem:[%s188 + $0xc] sm:$0xf] %v1387
        %1490 = vst [vmem:[%s188 + $0x10] sm:$0xf] %v1388
        %1491 = vst [vmem:[%s188 + $0x14] sm:$0xf] %v1389
        %1492 = vst [vmem:[%s188 + $0x18] sm:$0xf] %v1390
        %1493 = vst [vmem:[%s188 + $0x1c] sm:$0xf] %v1391
        %1494 = vst [vmem:[%s188 + $0x20] sm:$0xf] %v1392
        %1495 = vst [vmem:[%s188 + $0x24] sm:$0xf] %v1393
        %1496 = vst [vmem:[%s188 + $0x28] sm:$0xf] %v1394
        %1497 = vst [vmem:[%s188 + $0x2c] sm:$0xf] %v1395
        %1498 = vst [vmem:[%s188 + $0x30] sm:$0xf] %v1396
        %1499 = vst [vmem:[%s188 + $0x34] sm:$0xf] %v1397
        %1500 = vst [vmem:[%s188 + $0x38] sm:$0xf] %v1398
        %1501 = vst [vmem:[%s188 + $0x3c] sm:$0xf] %v1399
        %1502 = vst [vmem:[%s188 + $0x40] sm:$0xf] %v1400
        %1503 = vst [vmem:[%s188 + $0x44] sm:$0xf] %v1401
        %1504 = vst [vmem:[%s188 + $0x48] sm:$0xf] %v1402
        %1505 = vst [vmem:[%s188 + $0x4c] sm:$0xf] %v1403
        %1506 = vst [vmem:[%s188 + $0x50] sm:$0xf] %v1404
        %1507 = vst [vmem:[%s188 + $0x54] sm:$0xf] %v1405
        %1508 = vst [vmem:[%s188 + $0x58] sm:$0xf] %v1406
        %1509 = vst [vmem:[%s188 + $0x5c] sm:$0xf] %v1407
        %1510 = vst [vmem:[%s188 + $0x60] sm:$0xf] %v1408
        %1511 = vst [vmem:[%s188 + $0x64] sm:$0xf] %v1409
        %1512 = vst [vmem:[%s188 + $0x68] sm:$0xf] %v1410
        %1513 = vst [vmem:[%s188 + $0x6c] sm:$0xf] %v1411
        %1514 = vst [vmem:[%s188 + $0x70] sm:$0xf] %v1412
        %1515 = vst [vmem:[%s188 + $0x74] sm:$0xf] %v1413
        %1516 = vst [vmem:[%s188 + $0x78] sm:$0xf] %v1414
        %1517 = vst [vmem:[%s188 + $0x7c] sm:$0xf] %v1415
        %1518 = vst [vmem:[%s188 + $0x80] sm:$0xf] %v1416
        %1519 = vst [vmem:[%s188 + $0x84] sm:$0xf] %v1417
        %1520 = vst [vmem:[%s188 + $0x88] sm:$0xf] %v1418
        %1521 = vst [vmem:[%s188 + $0x8c] sm:$0xf] %v1419
        %1522 = vst [vmem:[%s188 + $0x90] sm:$0xf] %v1420
        %1523 = vst [vmem:[%s188 + $0x94] sm:$0xf] %v1421
        %1524 = vst [vmem:[%s188 + $0x98] sm:$0xf] %v1422
        %1525 = vst [vmem:[%s188 + $0x9c] sm:$0xf] %v1423
        %1526 = vst [vmem:[%s188 + $0xa0] sm:$0xf] %v1424
        %1527 = vst [vmem:[%s188 + $0xa4] sm:$0xf] %v1425
        %1528 = vst [vmem:[%s188 + $0xa8] sm:$0xf] %v1426
        %1529 = vst [vmem:[%s188 + $0xac] sm:$0xf] %v1427
        %1530 = vst [vmem:[%s188 + $0xb0] sm:$0xf] %v1428
        %1531 = vst [vmem:[%s188 + $0xb4] sm:$0xf] %v1429
        %1532 = vst [vmem:[%s188 + $0xb8] sm:$0xf] %v1430
        %1533 = vst [vmem:[%s188 + $0xbc] sm:$0xf] %v1431
        %1534 = vst [vmem:[%s188 + $0xc0] sm:$0xf] %v1432
        %1535 = vst [vmem:[%s188 + $0xc4] sm:$0xf] %v1433
        %1536 = vst [vmem:[%s188 + $0xc8] sm:$0xf] %v1434
        %s1537 = sand.u32 %s109, 1
        %s1538 = scalar_lea.sflag [#allocation3], %s1537
        %s1539 = sand.u32 %s109, 1
        %s1540 = smul.addr %s1539, 204
        %s1541 = scalar_lea.vmem [#allocation2], %s1540
        // Predicated region
        $region33: #{tpu_custom_call.1} parent=31 // pred_check
          %p1542 = pneg %p119
        $region34: #{tpu_custom_call.1} parent=31 // pred_check_branch
          %1544 = sbr.rel (%p1542) target = $region36
        $region35: #{tpu_custom_call.1} parent=31 // pred_region
          %s1545 = smul.u32 3, %s22
          %s1547 = ssub.s32 3264, 3264
          %1548 = vsyncadd %s1538, %s1547
          %s1549 = smul.addr %s21, 51
          %s1550 = sadd.s32 %s1545, %s1549
          %s1551 = smul.addr %s1550, 64
          %s1552 = scalar_lea.hbm %s3, %s1551
          %s1553 = sshll.u32 %s1541, 4
          %s1554 = int_to_ptr.vmem [resolvable:$true] %s1553
          %1559 = dma.vmem_to_hbm [thread:$0]  %s1554, 3264, %s1552, %s1538, 64, 64, 4
        $region36: #{tpu_custom_call.1} parent=31 // pred_fallthru
          _
      $region32: #{tpu_custom_call.1} parent=5 // pred_fallthru
        _
      %p1560 = scmp.le.s32.totalorder 2, %s12
      // Predicated region
      $region37: #{tpu_custom_call.1} parent=5 // pred_check
        %p1561 = pneg %p1560
      $region38: #{tpu_custom_call.1} parent=5 // pred_check_branch
        %1563 = sbr.rel (%p1561) target = $region40
      $region39: #{tpu_custom_call.1} parent=5 // pred_region
        %s1564 = ssub.s32 %s12, 2
        // Predicated region
        $region41: #{tpu_custom_call.1} parent=39 // pred_check
          %p1565 = pneg %p125
        $region42: #{tpu_custom_call.1} parent=39 // pred_check_branch
          %1567 = sbr.rel (%p1565) target = $region44
        $region43: #{tpu_custom_call.1} parent=39 // pred_region
          %s1568 = sand.u32 %s110, 1
          %s1569 = scalar_lea.sflag [#allocation3], %s1568
          %s1570 = sand.u32 %s110, 1
          %s1571 = smul.addr %s1570, 204
          %s1572 = scalar_lea.vmem [#allocation2], %s1571
          %1573 = dma.done %s1569, 3264
        $region44: #{tpu_custom_call.1} parent=39 // pred_fallthru
          _
      $region40: #{tpu_custom_call.1} parent=5 // pred_fallthru
        _
    $region6: #{tpu_custom_call.1} parent=1 // loop_footer
      %s16 = sadd.s32 1, %s12
    $region7: #{tpu_custom_call.1} parent=1 // loop_footer_branch
      %11 = sbr.rel target = $region3
    $region8: #{tpu_custom_call.1} parent=1 // loop_exit
      _
    %1574 = vsyncpa [#allocation3], 1
    %s1575 = scalar_lea.sflag [#allocation3], 1
    %1576 = vsyncpa %s1575, 1

// kernel: tpu_custom_call.1
$region0: #{tpu_custom_call.1}
  #allocation0 [shape = 'u32[]', space=smem, size = 0x4, offset = 0x4, fixed_abs, tag = 'smem constant byte address 0x4 - core index']
  #allocation1 [shape = 'u32[144,128]{1,0:T(1,128)}', space=vmem, size = 0x12000, scoped, tag = 'internal scratch']
  %s0 = inlined_call_operand.vmem [shape: bf16[2,18,24,8], index: 0, kind: input, shape index: {}]
  %s1 = inlined_call_operand.vmem [shape: bf16[2,8,128], index: 1, kind: input, shape index: {}]
  %s2 = inlined_call_operand.vmem [shape: f32[1,128], index: 2, kind: input, shape index: {}]
  %s3 = inlined_call_operand.hbm [shape: bf16[2,17,24,128], index: 3, kind: output, shape index: {}]
  %s4 = sld [smem:[#allocation0]]
  $region45: #{tpu_custom_call.1} parent=0
    _
  %s6 = ssub.s32 1, %s4
  %s7 = scalar_select 0, %s6, %s4
  $region1: #{tpu_custom_call.1} parent=0
    #allocation2 [shape = 'u8[208896]{0}', space=vmem, size = 0x33000, scoped, tag = 'output window, operand 0']
    #allocation3 [shape = 's32[2]{0}', space=sflag, size = 0x8, scoped, tag = 'scoped memory for tpu_custom_call.1']
    %8 = vsyncpa [#allocation3], 0
    %s9 = scalar_lea.sflag [#allocation3], 1
    %10 = vsyncpa %s9, 0
    loop: start=0, step=1, limit=4
    $region2: #{tpu_custom_call.1} parent=1 // loop_pre_header
      _
    $region3: #{tpu_custom_call.1} parent=1 // loop_header
      %s12 = sphi 0, %s16
      %p13 = scmp.ge.s32.totalorder %s12, 4
      %s19 = sphi 0, %s31
      %s20 = sphi 0, %s27
      %s21 = sphi 0, %s19
      %s22 = sphi 0, %s20
      %s23 = sphi 0, %s21
      %s24 = sphi 0, %s22
      %s36 = sphi 0, %s38
      %s39 = sphi 0, %s36
      %s40 = sphi 0, %s39
      %s56 = sphi 0, %s40
      %s60 = sphi 0, %s60
      %s62 = sphi 0, %s60
      %s63 = sphi 0, %s62
      %s77 = sphi 0, %s63
      %s81 = sphi 0, %s81
      %s83 = sphi 0, %s81
      %s84 = sphi 0, %s83
      %s98 = sphi 0, %s84
      %s106 = sphi 0, %s108
      %s109 = sphi 0, %s106
      %s110 = sphi 0, %s109
      %s126 = sphi 0, %s110
    $region4: #{tpu_custom_call.1} parent=1 // loop_header_branch
      %15 = sbr.rel (%p13) target = $region8
    $region5: #{tpu_custom_call.1} parent=1 // loop_body
      %s17 = ssub.s32 %s12, 1
      %s18 = ssub.s32 %s12, 2
      %s25 = sadd.s32 1, %s20
      %p26 = scmp.ge.s32.totalorder %s25, 1
      %s27 = scalar_select %p26, 0, %s25
      %s28 = sadd.s32 1, %s19
      %s29 = scalar_select %p26, %s28, %s19
      %p30 = scmp.ge.s32.totalorder %s29, 2
      %s31 = scalar_select %p30, 0, %s29
      %s32 = ssub.s32 %s19, %s31
      %s33 = ssub.s32 %s20, %s27
      %s34 = sor.u32 %s32, %s33
      %p35 = scmp.eq.s32.totalorder %s34, 0
      %s37 = sadd.s32 %s36, 1
      %s38 = scalar_select %p35, %s36, %s37
      %p41 = pneg %p35
      %p42 = scmp.eq.s32.totalorder %s12, 1
      %p43 = por %p41, %p42
      %p44 = scmp.ne.s32.totalorder %s36, %s39
      %p45 = scmp.eq.s32.totalorder %s12, 0
      %p46 = por %p44, %p45
      %p47 = scmp.ne.s32.totalorder %s36, %s39
      %p48 = scmp.eq.s32.totalorder %s17, 1
      %p49 = por %p47, %p48
      %p50 = scmp.ne.s32.totalorder %s39, %s40
      %p51 = scmp.eq.s32.totalorder %s17, 0
      %p52 = por %p50, %p51
      %p53 = scmp.ne.s32.totalorder %s39, %s40
      %p54 = scmp.eq.s32.totalorder %s18, 1
      %p55 = por %p53, %p54
      %p57 = scmp.ne.s32.totalorder %s40, %s56
      %p58 = scmp.eq.s32.totalorder %s18, 0
      %p59 = por %p57, %p58
      %s61 = sadd.s32 %s60, 1
      %p64 = scmp.eq.s32.totalorder %s12, 1
      %p65 = scmp.ne.s32.totalorder %s60, %s62
      %p66 = scmp.eq.s32.totalorder %s12, 0
      %p67 = por %p65, %p66
      %p68 = scmp.ne.s32.totalorder %s60, %s62
      %p69 = scmp.eq.s32.totalorder %s17, 1
      %p70 = por %p68, %p69
      %p71 = scmp.ne.s32.totalorder %s62, %s63
      %p72 = scmp.eq.s32.totalorder %s17, 0
      %p73 = por %p71, %p72
      %p74 = scmp.ne.s32.totalorder %s62, %s63
      %p75 = scmp.eq.s32.totalorder %s18, 1
      %p76 = por %p74, %p75
      %p78 = scmp.ne.s32.totalorder %s63, %s77
      %p79 = scmp.eq.s32.totalorder %s18, 0
      %p80 = por %p78, %p79
      %s82 = sadd.s32 %s81, 1
      %p85 = scmp.eq.s32.totalorder %s12, 1
      %p86 = scmp.ne.s32.totalorder %s81, %s83
      %p87 = scmp.eq.s32.totalorder %s12, 0
      %p88 = por %p86, %p87
      %p89 = scmp.ne.s32.totalorder %s81, %s83
      %p90 = scmp.eq.s32.totalorder %s17, 1
      %p91 = por %p89, %p90
      %p92 = scmp.ne.s32.totalorder %s83, %s84
      %p93 = scmp.eq.s32.totalorder %s17, 0
      %p94 = por %p92, %p93
      %p95 = scmp.ne.s32.totalorder %s83, %s84
      %p96 = scmp.eq.s32.totalorder %s18, 1
      %p97 = por %p95, %p96
      %p99 = scmp.ne.s32.totalorder %s84, %s98
      %p100 = scmp.eq.s32.totalorder %s18, 0
      %p101 = por %p99, %p100
      %s102 = ssub.s32 %s19, %s31
      %s103 = ssub.s32 %s20, %s27
      %s104 = sor.u32 %s102, %s103
      %p105 = scmp.eq.s32.totalorder %s104, 0
      %s107 = sadd.s32 %s106, 1
      %s108 = scalar_select %p105, %s106, %s107
      %p111 = pneg %p105
      %p112 = scmp.eq.s32.totalorder %s12, 1
      %p113 = por %p111, %p112
      %p114 = scmp.ne.s32.totalorder %s106, %s109
      %p115 = scmp.eq.s32.totalorder %s12, 0
      %p116 = por %p114, %p115
      %p117 = scmp.ne.s32.totalorder %s106, %s109
      %p118 = scmp.eq.s32.totalorder %s17, 1
      %p119 = por %p117, %p118
      %p120 = scmp.ne.s32.totalorder %s109, %s110
      %p121 = scmp.eq.s32.totalorder %s17, 0
      %p122 = por %p120, %p121
      %p123 = scmp.ne.s32.totalorder %s109, %s110
      %p124 = scmp.eq.s32.totalorder %s18, 1
      %p125 = por %p123, %p124
      %p127 = scmp.ne.s32.totalorder %s110, %s126
      %p128 = scmp.eq.s32.totalorder %s18, 0
      %p129 = por %p127, %p128
      %p130 = scmp.le.s32.totalorder 1, %s12
      %p131 = scmp.lt.s32.totalorder %s12, 3
      %p132 = pnand %p130, %p131
      %p133 = pneg %p132
      // Predicated region
      $region9: #{tpu_custom_call.1} parent=5 // pred_check
        _
      $region10: #{tpu_custom_call.1} parent=5 // pred_check_branch
        %135 = sbr.rel (%p132) target = $region12
      $region11: #{tpu_custom_call.1} parent=5 // pred_region
        %s136 = ssub.s32 %s12, 1
        // Predicated region
        $region13: #{tpu_custom_call.1} parent=11 // pred_check
          %p137 = pneg %p73
        $region14: #{tpu_custom_call.1} parent=11 // pred_check_branch
          %139 = sbr.rel (%p137) target = $region16
        $region15: #{tpu_custom_call.1} parent=11 // pred_region
          _
        $region16: #{tpu_custom_call.1} parent=11 // pred_fallthru
          _
        // Predicated region
        $region17: #{tpu_custom_call.1} parent=11 // pred_check
          %p140 = pneg %p94
        $region18: #{tpu_custom_call.1} parent=11 // pred_check_branch
          %142 = sbr.rel (%p140) target = $region20
        $region19: #{tpu_custom_call.1} parent=11 // pred_region
          _
        $region20: #{tpu_custom_call.1} parent=11 // pred_fallthru
          _
      $region12: #{tpu_custom_call.1} parent=5 // pred_fallthru
        _
      %p143 = scmp.lt.s32.totalorder %s12, 2
      // Predicated region
      $region21: #{tpu_custom_call.1} parent=5 // pred_check
        %p144 = pneg %p143
      $region22: #{tpu_custom_call.1} parent=5 // pred_check_branch
        %146 = sbr.rel (%p144) target = $region24
      $region23: #{tpu_custom_call.1} parent=5 // pred_region
        // Predicated region
        $region25: #{tpu_custom_call.1} parent=23 // pred_check
          %p147 = pneg %p46
        $region26: #{tpu_custom_call.1} parent=23 // pred_check_branch
          %149 = sbr.rel (%p147) target = $region28
        $region27: #{tpu_custom_call.1} parent=23 // pred_region
          %s150 = smul.u32 3, %s20
          %p151 = scmp.lt.s32.totalorder %s19, 1
          %s152 = scalar_select %p151, %s19, 1
          %p153 = scmp.lt.s32.totalorder %s150, 2
          %s154 = scalar_select %p153, %s150, 2
          %s155 = smul.addr %s152, 54
          %s156 = sadd.s32 %s154, %s155
          %s157 = smul.addr %s156, 4
          %s158 = scalar_lea.vmem %s0, %s157
          %s159 = smul.u32 3, %s20
        $region28: #{tpu_custom_call.1} parent=23 // pred_fallthru
          _
      $region24: #{tpu_custom_call.1} parent=5 // pred_fallthru
        _
      %p160 = scmp.le.s32.totalorder 1, %s12
      %p161 = scmp.lt.s32.totalorder %s12, 3
      %p162 = pnand %p160, %p161
      %p163 = pneg %p162
      // Predicated region
      $region29: #{tpu_custom_call.1} parent=5 // pred_check
        _
      $region30: #{tpu_custom_call.1} parent=5 // pred_check_branch
        %165 = sbr.rel (%p162) target = $region32
      $region31: #{tpu_custom_call.1} parent=5 // pred_region
        %s166 = ssub.s32 %s12, 1
        %s167 = smul.u32 3, %s22
        %p168 = scmp.lt.s32.totalorder %s21, 1
        %s169 = scalar_select %p168, %s21, 1
        %p170 = scmp.lt.s32.totalorder %s167, 2
        %s171 = scalar_select %p170, %s167, 2
        %s172 = smul.addr %s169, 54
        %s173 = sadd.s32 %s171, %s172
        %s174 = smul.addr %s173, 4
        %s175 = scalar_lea.vmem %s0, %s174
        %p176 = pneg %p52
        %p177 = pneg %p49
        %p178 = pneg %p73
        %p179 = pneg %p70
        %p180 = pneg %p94
        %p181 = pneg %p91
        %p182 = pneg %p122
        %p183 = pneg %p119
        %s184 = sand.u32 %s109, 1
        %s185 = scalar_lea.sflag [#allocation3], %s184
        %s186 = sand.u32 %s109, 1
        %s187 = smul.addr %s186, 204
        %s188 = scalar_lea.vmem [#allocation2], %s187
        %s189 = smul.u32 3, %s22
        %p190 = scmp.lt.s32.totalorder %s21, 1
        %s191 = scalar_select %p190, %s21, 1
        %p192 = scmp.lt.s32.totalorder %s189, 2
        %s193 = scalar_select %p192, %s189, 2
        %s194 = smul.addr %s191, 54
        %s195 = sadd.s32 %s193, %s194
        %s196 = smul.addr %s195, 4
        %s197 = scalar_lea.vmem %s0, %s196
        %s198 = smul.u32 3, %s22
        %s199 = smul.u32 3, %s22
        %v201 = vld [vmem:[%s197] sm:$0xf]
        %v202 = vld [vmem:[%s197 + $0x4] sm:$0xf]
        %v203 = vld [vmem:[%s197 + $0x8] sm:$0xf]
        %v204 = vld [vmem:[%s197 + $0xc] sm:$0xf]
        %v205 = vld [vmem:[%s197 + $0x10] sm:$0xf]
        %v206 = vld [vmem:[%s197 + $0x14] sm:$0xf]
        %v207 = vld [vmem:[%s197 + $0x18] sm:$0xf]
        %v208 = vld [vmem:[%s197 + $0x1c] sm:$0xf]
        %v209 = vld [vmem:[%s197 + $0x20] sm:$0xf]
        %v210 = vld [vmem:[%s197 + $0x24] sm:$0xf]
        %v211 = vld [vmem:[%s197 + $0x28] sm:$0xf]
        %v212 = vld [vmem:[%s197 + $0x2c] sm:$0xf]
        %v213 = vld [vmem:[%s197 + $0x30] sm:$0xf]
        %v214 = vld [vmem:[%s197 + $0x34] sm:$0xf]
        %v215 = vld [vmem:[%s197 + $0x38] sm:$0xf]
        %v216 = vld [vmem:[%s197 + $0x3c] sm:$0xf]
        %v217 = vld [vmem:[%s197 + $0x40] sm:$0xf]
        %v218 = vld [vmem:[%s197 + $0x44] sm:$0xf]
        %v219 = vld [vmem:[%s197 + $0x48] sm:$0xf]
        %v220 = vld [vmem:[%s197 + $0x4c] sm:$0xf]
        %v221 = vld [vmem:[%s197 + $0x50] sm:$0xf]
        %v222 = vld [vmem:[%s197 + $0x54] sm:$0xf]
        %v223 = vld [vmem:[%s197 + $0x58] sm:$0xf]
        %v224 = vld [vmem:[%s197 + $0x5c] sm:$0xf]
        %v225 = vld [vmem:[%s197 + $0x60] sm:$0xf]
        %v226 = vld [vmem:[%s197 + $0x64] sm:$0xf]
        %v227 = vld [vmem:[%s197 + $0x68] sm:$0xf]
        %v228 = vld [vmem:[%s197 + $0x6c] sm:$0xf]
        %v229 = vld [vmem:[%s197 + $0x70] sm:$0xf]
        %v230 = vld [vmem:[%s197 + $0x74] sm:$0xf]
        %v231 = vld [vmem:[%s197 + $0x78] sm:$0xf]
        %v232 = vld [vmem:[%s197 + $0x7c] sm:$0xf]
        %v233 = vld [vmem:[%s197 + $0x80] sm:$0xf]
        %v234 = vld [vmem:[%s197 + $0x84] sm:$0xf]
        %v235 = vld [vmem:[%s197 + $0x88] sm:$0xf]
        %v236 = vld [vmem:[%s197 + $0x8c] sm:$0xf]
        %v237 = vld [vmem:[%s197 + $0x90] sm:$0xf]
        %v238 = vld [vmem:[%s197 + $0x94] sm:$0xf]
        %v239 = vld [vmem:[%s197 + $0x98] sm:$0xf]
        %v240 = vld [vmem:[%s197 + $0x9c] sm:$0xf]
        %v241 = vld [vmem:[%s197 + $0xa0] sm:$0xf]
        %v242 = vld [vmem:[%s197 + $0xa4] sm:$0xf]
        %v243 = vld [vmem:[%s197 + $0xa8] sm:$0xf]
        %v244 = vld [vmem:[%s197 + $0xac] sm:$0xf]
        %v245 = vld [vmem:[%s197 + $0xb0] sm:$0xf]
        %v246 = vld [vmem:[%s197 + $0xb4] sm:$0xf]
        %v247 = vld [vmem:[%s197 + $0xb8] sm:$0xf]
        %v248 = vld [vmem:[%s197 + $0xbc] sm:$0xf]
        %v249 = vld [vmem:[%s197 + $0xc0] sm:$0xf]
        %v250 = vld [vmem:[%s197 + $0xc4] sm:$0xf]
        %v251 = vld [vmem:[%s197 + $0xc8] sm:$0xf]
        %v252 = vld [vmem:[%s1] sm:$0xf]
        %s253 = scalar_lea.vmem %s197, 12
        %v254 = vld [vmem:[%s253] sm:$0xf]
        %v255 = vld [vmem:[%s253 + $0x4] sm:$0xf]
        %v256 = vld [vmem:[%s253 + $0x8] sm:$0xf]
        %v257 = vld [vmem:[%s253 + $0xc] sm:$0xf]
        %v258 = vld [vmem:[%s253 + $0x10] sm:$0xf]
        %v259 = vld [vmem:[%s253 + $0x14] sm:$0xf]
        %v260 = vld [vmem:[%s253 + $0x18] sm:$0xf]
        %v261 = vld [vmem:[%s253 + $0x1c] sm:$0xf]
        %v262 = vld [vmem:[%s253 + $0x20] sm:$0xf]
        %v263 = vld [vmem:[%s253 + $0x24] sm:$0xf]
        %v264 = vld [vmem:[%s253 + $0x28] sm:$0xf]
        %v265 = vld [vmem:[%s253 + $0x2c] sm:$0xf]
        %v266 = vld [vmem:[%s253 + $0x30] sm:$0xf]
        %v267 = vld [vmem:[%s253 + $0x34] sm:$0xf]
        %v268 = vld [vmem:[%s253 + $0x38] sm:$0xf]
        %v269 = vld [vmem:[%s253 + $0x3c] sm:$0xf]
        %v270 = vld [vmem:[%s253 + $0x40] sm:$0xf]
        %v271 = vld [vmem:[%s253 + $0x44] sm:$0xf]
        %v272 = vld [vmem:[%s253 + $0x48] sm:$0xf]
        %v273 = vld [vmem:[%s253 + $0x4c] sm:$0xf]
        %v274 = vld [vmem:[%s253 + $0x50] sm:$0xf]
        %v275 = vld [vmem:[%s253 + $0x54] sm:$0xf]
        %v276 = vld [vmem:[%s253 + $0x58] sm:$0xf]
        %v277 = vld [vmem:[%s253 + $0x5c] sm:$0xf]
        %v278 = vld [vmem:[%s253 + $0x60] sm:$0xf]
        %v279 = vld [vmem:[%s253 + $0x64] sm:$0xf]
        %v280 = vld [vmem:[%s253 + $0x68] sm:$0xf]
        %v281 = vld [vmem:[%s253 + $0x6c] sm:$0xf]
        %v282 = vld [vmem:[%s253 + $0x70] sm:$0xf]
        %v283 = vld [vmem:[%s253 + $0x74] sm:$0xf]
        %v284 = vld [vmem:[%s253 + $0x78] sm:$0xf]
        %v285 = vld [vmem:[%s253 + $0x7c] sm:$0xf]
        %v286 = vld [vmem:[%s253 + $0x80] sm:$0xf]
        %v287 = vld [vmem:[%s253 + $0x84] sm:$0xf]
        %v288 = vld [vmem:[%s253 + $0x88] sm:$0xf]
        %v289 = vld [vmem:[%s253 + $0x8c] sm:$0xf]
        %v290 = vld [vmem:[%s253 + $0x90] sm:$0xf]
        %v291 = vld [vmem:[%s253 + $0x94] sm:$0xf]
        %v292 = vld [vmem:[%s253 + $0x98] sm:$0xf]
        %v293 = vld [vmem:[%s253 + $0x9c] sm:$0xf]
        %v294 = vld [vmem:[%s253 + $0xa0] sm:$0xf]
        %v295 = vld [vmem:[%s253 + $0xa4] sm:$0xf]
        %v296 = vld [vmem:[%s253 + $0xa8] sm:$0xf]
        %v297 = vld [vmem:[%s253 + $0xac] sm:$0xf]
        %v298 = vld [vmem:[%s253 + $0xb0] sm:$0xf]
        %v299 = vld [vmem:[%s253 + $0xb4] sm:$0xf]
        %v300 = vld [vmem:[%s253 + $0xb8] sm:$0xf]
        %v301 = vld [vmem:[%s253 + $0xbc] sm:$0xf]
        %v302 = vld [vmem:[%s253 + $0xc0] sm:$0xf]
        %v303 = vld [vmem:[%s253 + $0xc4] sm:$0xf]
        %v304 = vld [vmem:[%s253 + $0xc8] sm:$0xf]
        %s305 = scalar_lea.vmem %s1, 4
        %v306 = vld [vmem:[%s305] sm:$0xf]
        %v358 = vunpack.c.l.b16 %v254
        %v359 = vunpack.c.l.b16 %v255
        %v360 = vunpack.c.l.b16 %v256
        %v361 = vunpack.c.l.b16 %v257
        %v362 = vunpack.c.l.b16 %v258
        %v363 = vunpack.c.l.b16 %v259
        %v364 = vunpack.c.l.b16 %v260
        %v365 = vunpack.c.l.b16 %v261
        %v366 = vunpack.c.l.b16 %v262
        %v367 = vunpack.c.l.b16 %v263
        %v368 = vunpack.c.l.b16 %v264
        %v369 = vunpack.c.l.b16 %v265
        %v370 = vunpack.c.l.b16 %v266
        %v371 = vunpack.c.l.b16 %v267
        %v372 = vunpack.c.l.b16 %v268
        %v373 = vunpack.c.l.b16 %v269
        %v374 = vunpack.c.l.b16 %v270
        %v375 = vunpack.c.l.b16 %v271
        %v376 = vunpack.c.l.b16 %v272
        %v377 = vunpack.c.l.b16 %v273
        %v378 = vunpack.c.l.b16 %v274
        %v379 = vunpack.c.l.b16 %v275
        %v380 = vunpack.c.l.b16 %v276
        %v381 = vunpack.c.l.b16 %v277
        %v382 = vunpack.c.l.b16 %v278
        %v383 = vunpack.c.l.b16 %v279
        %v384 = vunpack.c.l.b16 %v280
        %v385 = vunpack.c.l.b16 %v281
        %v386 = vunpack.c.l.b16 %v282
        %v387 = vunpack.c.l.b16 %v283
        %v388 = vunpack.c.l.b16 %v284
        %v389 = vunpack.c.l.b16 %v285
        %v390 = vunpack.c.l.b16 %v286
        %v391 = vunpack.c.l.b16 %v287
        %v392 = vunpack.c.l.b16 %v288
        %v393 = vunpack.c.l.b16 %v289
        %v394 = vunpack.c.l.b16 %v290
        %v395 = vunpack.c.l.b16 %v291
        %v396 = vunpack.c.l.b16 %v292
        %v397 = vunpack.c.l.b16 %v293
        %v398 = vunpack.c.l.b16 %v294
        %v399 = vunpack.c.l.b16 %v295
        %v400 = vunpack.c.l.b16 %v296
        %v401 = vunpack.c.l.b16 %v297
        %v402 = vunpack.c.l.b16 %v298
        %v403 = vunpack.c.l.b16 %v299
        %v404 = vunpack.c.l.b16 %v300
        %v405 = vunpack.c.l.b16 %v301
        %v406 = vunpack.c.l.b16 %v302
        %v407 = vunpack.c.l.b16 %v303
        %v408 = vunpack.c.l.b16 %v304
        %v409 = vpack.c.b16 %v359, %v358
        %v410 = vpack.c.b16 %v361, %v360
        %v411 = vpack.c.b16 %v363, %v362
        %v412 = vpack.c.b16 %v365, %v364
        %v413 = vpack.c.b16 %v367, %v366
        %v414 = vpack.c.b16 %v369, %v368
        %v415 = vpack.c.b16 %v371, %v370
        %v416 = vpack.c.b16 %v373, %v372
        %v417 = vpack.c.b16 %v375, %v374
        %v418 = vpack.c.b16 %v377, %v376
        %v419 = vpack.c.b16 %v379, %v378
        %v420 = vpack.c.b16 %v381, %v380
        %v421 = vpack.c.b16 %v383, %v382
        %v422 = vpack.c.b16 %v385, %v384
        %v423 = vpack.c.b16 %v387, %v386
        %v424 = vpack.c.b16 %v389, %v388
        %v425 = vpack.c.b16 %v391, %v390
        %v426 = vpack.c.b16 %v393, %v392
        %v427 = vpack.c.b16 %v395, %v394
        %v428 = vpack.c.b16 %v397, %v396
        %v429 = vpack.c.b16 %v399, %v398
        %v430 = vpack.c.b16 %v401, %v400
        %v431 = vpack.c.b16 %v403, %v402
        %v432 = vpack.c.b16 %v405, %v404
        %v433 = vpack.c.b16 %v407, %v406
        %v434 = vpack.c.b16 %v408, %v408
        %vm435 = vcmask 64512
        %v437 = vsel %vm435, %v409, 0
        %v440 = vsel %vm435, %v410, 0
        %v443 = vsel %vm435, %v411, 0
        %v446 = vsel %vm435, %v412, 0
        %v449 = vsel %vm435, %v413, 0
        %v452 = vsel %vm435, %v414, 0
        %v455 = vsel %vm435, %v415, 0
        %v458 = vsel %vm435, %v416, 0
        %v461 = vsel %vm435, %v417, 0
        %v464 = vsel %vm435, %v418, 0
        %v467 = vsel %vm435, %v419, 0
        %v470 = vsel %vm435, %v420, 0
        %v473 = vsel %vm435, %v421, 0
        %v476 = vsel %vm435, %v422, 0
        %v479 = vsel %vm435, %v423, 0
        %v482 = vsel %vm435, %v424, 0
        %v485 = vsel %vm435, %v425, 0
        %v488 = vsel %vm435, %v426, 0
        %v491 = vsel %vm435, %v427, 0
        %v494 = vsel %vm435, %v428, 0
        %v497 = vsel %vm435, %v429, 0
        %v500 = vsel %vm435, %v430, 0
        %v503 = vsel %vm435, %v431, 0
        %v506 = vsel %vm435, %v432, 0
        %v509 = vsel %vm435, %v433, 0
        %v512 = vsel %vm435, %v434, 0
        %vm514 = vcmask 1043456
        %v516 = vsel %vm514, %v306, 0
        %518 = vmatprep.subr.bf16.mxu0 0
        %519 = vmatpush1.bf16.msra.mxu0 %v516
        %520 = vmatprep.subr.bf16.mxu0 0
        %521 = vmatpush1.bf16.msra.mxu0 0
        %522 = vmatprep.subr.bf16.mxu0 0
        %523 = vmatpush1.bf16.msra.mxu0 0
        %524 = vmatprep.subr.bf16.mxu0 0
        %525 = vmatpush1.bf16.msra.mxu0 0
        %526 = vmatprep.subr.bf16.mxu0 0
        %527 = vmatpush1.bf16.msra.mxu0 0
        %528 = vmatprep.subr.bf16.mxu0 0
        %529 = vmatpush1.bf16.msra.mxu0 0
        %530 = vmatprep.subr.bf16.mxu0 0
        %531 = vmatpush1.bf16.msra.mxu0 0
        %532 = vmatprep.subr.bf16.mxu0 0
        %533 = vmatpush1.bf16.msra.mxu0 0
        %534 = vmatprep.subr.bf16.mxu0 0
        %535 = vmatpush1.bf16.msra.mxu0 0
        %536 = vmatprep.subr.bf16.mxu0 0
        %537 = vmatpush1.bf16.msra.mxu0 0
        %538 = vmatprep.subr.bf16.mxu0 0
        %539 = vmatpush1.bf16.msra.mxu0 0
        %540 = vmatprep.subr.bf16.mxu0 0
        %541 = vmatpush1.bf16.msra.mxu0 0
        %542 = vmatprep.subr.bf16.mxu0 0
        %543 = vmatpush1.bf16.msra.mxu0 0
        %544 = vmatprep.subr.bf16.mxu0 0
        %545 = vmatpush1.bf16.msra.mxu0 0
        %546 = vmatprep.subr.bf16.mxu0 0
        %547 = vmatpush1.bf16.msra.mxu0 0
        %548 = vmatprep.subr.bf16.mxu0 0
        %549 = vmatpush1.bf16.msra.mxu0 0
        %550 = vmatprep.mubr.bf16.mxu0 0
        %551 = vmatmul.mubr.bf16.gmra.mrb[0].mxu0 %v437
        %v552 = vpop.f32.mrb[0].mxu0
        %v553 = vadd.f32 0.0, %v552
        %v554 = vpop.f32.mrb[0].mxu0
        %v555 = vpop.f32.mrb[0].mxu0
        %v556 = vadd.f32 0.0, %v555
        %v557 = vpop.f32.mrb[0].mxu0
        %558 = vmatprep.mubr.bf16.mxu0 0
        %559 = vmatmul.mubr.bf16.gmra.mrb[0].mxu0 %v440
        %v560 = vpop.f32.mrb[0].mxu0
        %v561 = vadd.f32 0.0, %v560
        %v562 = vpop.f32.mrb[0].mxu0
        %v563 = vpop.f32.mrb[0].mxu0
        %v564 = vadd.f32 0.0, %v563
        %v565 = vpop.f32.mrb[0].mxu0
        %566 = vmatprep.mubr.bf16.mxu0 0
        %567 = vmatmul.mubr.bf16.gmra.mrb[0].mxu0 %v443
        %v568 = vpop.f32.mrb[0].mxu0
        %v569 = vadd.f32 0.0, %v568
        %v570 = vpop.f32.mrb[0].mxu0
        %v571 = vpop.f32.mrb[0].mxu0
        %v572 = vadd.f32 0.0, %v571
        %v573 = vpop.f32.mrb[0].mxu0
        %574 = vmatprep.mubr.bf16.mxu0 0
        %575 = vmatmul.mubr.bf16.gmra.mrb[0].mxu0 %v446
        %v576 = vpop.f32.mrb[0].mxu0
        %v577 = vadd.f32 0.0, %v576
        %v578 = vpop.f32.mrb[0].mxu0
        %v579 = vpop.f32.mrb[0].mxu0
        %v580 = vadd.f32 0.0, %v579
        %v581 = vpop.f32.mrb[0].mxu0
        %582 = vmatprep.mubr.bf16.mxu0 0
        %583 = vmatmul.mubr.bf16.gmra.mrb[0].mxu0 %v449
        %v584 = vpop.f32.mrb[0].mxu0
        %v585 = vadd.f32 0.0, %v584
        %v586 = vpop.f32.mrb[0].mxu0
        %v587 = vpop.f32.mrb[0].mxu0
        %v588 = vadd.f32 0.0, %v587
        %v589 = vpop.f32.mrb[0].mxu0
        %590 = vmatprep.mubr.bf16.mxu0 0
        %591 = vmatmul.mubr.bf16.gmra.mrb[0].mxu0 %v452
        %v592 = vpop.f32.mrb[0].mxu0
        %v593 = vadd.f32 0.0, %v592
        %v594 = vpop.f32.mrb[0].mxu0
        %v595 = vpop.f32.mrb[0].mxu0
        %v596 = vadd.f32 0.0, %v595
        %v597 = vpop.f32.mrb[0].mxu0
        %598 = vmatprep.mubr.bf16.mxu0 0
        %599 = vmatmul.mubr.bf16.gmra.mrb[0].mxu0 %v455
        %v600 = vpop.f32.mrb[0].mxu0
        %v601 = vadd.f32 0.0, %v600
        %v602 = vpop.f32.mrb[0].mxu0
        %v603 = vpop.f32.mrb[0].mxu0
        %v604 = vadd.f32 0.0, %v603
        %v605 = vpop.f32.mrb[0].mxu0
        %606 = vmatprep.mubr.bf16.mxu0 0
        %607 = vmatmul.mubr.bf16.gmra.mrb[0].mxu0 %v458
        %v608 = vpop.f32.mrb[0].mxu0
        %v609 = vadd.f32 0.0, %v608
        %v610 = vpop.f32.mrb[0].mxu0
        %v611 = vpop.f32.mrb[0].mxu0
        %v612 = vadd.f32 0.0, %v611
        %v613 = vpop.f32.mrb[0].mxu0
        %614 = vmatprep.mubr.bf16.mxu0 0
        %615 = vmatmul.mubr.bf16.gmra.mrb[0].mxu0 %v461
        %v616 = vpop.f32.mrb[0].mxu0
        %v617 = vadd.f32 0.0, %v616
        %v618 = vpop.f32.mrb[0].mxu0
        %v619 = vpop.f32.mrb[0].mxu0
        %v620 = vadd.f32 0.0, %v619
        %v621 = vpop.f32.mrb[0].mxu0
        %622 = vmatprep.mubr.bf16.mxu0 0
        %623 = vmatmul.mubr.bf16.gmra.mrb[0].mxu0 %v464
        %v624 = vpop.f32.mrb[0].mxu0
        %v625 = vadd.f32 0.0, %v624
        %v626 = vpop.f32.mrb[0].mxu0
        %v627 = vpop.f32.mrb[0].mxu0
        %v628 = vadd.f32 0.0, %v627
        %v629 = vpop.f32.mrb[0].mxu0
        %630 = vmatprep.mubr.bf16.mxu0 0
        %631 = vmatmul.mubr.bf16.gmra.mrb[0].mxu0 %v467
        %v632 = vpop.f32.mrb[0].mxu0
        %v633 = vadd.f32 0.0, %v632
        %v634 = vpop.f32.mrb[0].mxu0
        %v635 = vpop.f32.mrb[0].mxu0
        %v636 = vadd.f32 0.0, %v635
        %v637 = vpop.f32.mrb[0].mxu0
        %638 = vmatprep.mubr.bf16.mxu0 0
        %639 = vmatmul.mubr.bf16.gmra.mrb[0].mxu0 %v470
        %v640 = vpop.f32.mrb[0].mxu0
        %v641 = vadd.f32 0.0, %v640
        %v642 = vpop.f32.mrb[0].mxu0
        %v643 = vpop.f32.mrb[0].mxu0
        %v644 = vadd.f32 0.0, %v643
        %v645 = vpop.f32.mrb[0].mxu0
        %646 = vmatprep.mubr.bf16.mxu0 0
        %647 = vmatmul.mubr.bf16.gmra.mrb[0].mxu0 %v473
        %v648 = vpop.f32.mrb[0].mxu0
        %v649 = vadd.f32 0.0, %v648
        %v650 = vpop.f32.mrb[0].mxu0
        %v651 = vpop.f32.mrb[0].mxu0
        %v652 = vadd.f32 0.0, %v651
        %v653 = vpop.f32.mrb[0].mxu0
        %654 = vmatprep.mubr.bf16.mxu0 0
        %655 = vmatmul.mubr.bf16.gmra.mrb[0].mxu0 %v476
        %v656 = vpop.f32.mrb[0].mxu0
        %v657 = vadd.f32 0.0, %v656
        %v658 = vpop.f32.mrb[0].mxu0
        %v659 = vpop.f32.mrb[0].mxu0
        %v660 = vadd.f32 0.0, %v659
        %v661 = vpop.f32.mrb[0].mxu0
        %662 = vmatprep.mubr.bf16.mxu0 0
        %663 = vmatmul.mubr.bf16.gmra.mrb[0].mxu0 %v479
        %v664 = vpop.f32.mrb[0].mxu0
        %v665 = vadd.f32 0.0, %v664
        %v666 = vpop.f32.mrb[0].mxu0
        %v667 = vpop.f32.mrb[0].mxu0
        %v668 = vadd.f32 0.0, %v667
        %v669 = vpop.f32.mrb[0].mxu0
        %670 = vmatprep.mubr.bf16.mxu0 0
        %671 = vmatmul.mubr.bf16.gmra.mrb[0].mxu0 %v482
        %v672 = vpop.f32.mrb[0].mxu0
        %v673 = vadd.f32 0.0, %v672
        %v674 = vpop.f32.mrb[0].mxu0
        %v675 = vpop.f32.mrb[0].mxu0
        %v676 = vadd.f32 0.0, %v675
        %v677 = vpop.f32.mrb[0].mxu0
        %678 = vmatprep.mubr.bf16.mxu0 0
        %679 = vmatmul.mubr.bf16.gmra.mrb[0].mxu0 %v485
        %v680 = vpop.f32.mrb[0].mxu0
        %v681 = vadd.f32 0.0, %v680
        %v682 = vpop.f32.mrb[0].mxu0
        %v683 = vpop.f32.mrb[0].mxu0
        %v684 = vadd.f32 0.0, %v683
        %v685 = vpop.f32.mrb[0].mxu0
        %686 = vmatprep.mubr.bf16.mxu0 0
        %687 = vmatmul.mubr.bf16.gmra.mrb[0].mxu0 %v488
        %v688 = vpop.f32.mrb[0].mxu0
        %v689 = vadd.f32 0.0, %v688
        %v690 = vpop.f32.mrb[0].mxu0
        %v691 = vpop.f32.mrb[0].mxu0
        %v692 = vadd.f32 0.0, %v691
        %v693 = vpop.f32.mrb[0].mxu0
        %694 = vmatprep.mubr.bf16.mxu0 0
        %695 = vmatmul.mubr.bf16.gmra.mrb[0].mxu0 %v491
        %v696 = vpop.f32.mrb[0].mxu0
        %v697 = vadd.f32 0.0, %v696
        %v698 = vpop.f32.mrb[0].mxu0
        %v699 = vpop.f32.mrb[0].mxu0
        %v700 = vadd.f32 0.0, %v699
        %v701 = vpop.f32.mrb[0].mxu0
        %702 = vmatprep.mubr.bf16.mxu0 0
        %703 = vmatmul.mubr.bf16.gmra.mrb[0].mxu0 %v494
        %v704 = vpop.f32.mrb[0].mxu0
        %v705 = vadd.f32 0.0, %v704
        %v706 = vpop.f32.mrb[0].mxu0
        %v707 = vpop.f32.mrb[0].mxu0
        %v708 = vadd.f32 0.0, %v707
        %v709 = vpop.f32.mrb[0].mxu0
        %710 = vmatprep.mubr.bf16.mxu0 0
        %711 = vmatmul.mubr.bf16.gmra.mrb[0].mxu0 %v497
        %v712 = vpop.f32.mrb[0].mxu0
        %v713 = vadd.f32 0.0, %v712
        %v714 = vpop.f32.mrb[0].mxu0
        %v715 = vpop.f32.mrb[0].mxu0
        %v716 = vadd.f32 0.0, %v715
        %v717 = vpop.f32.mrb[0].mxu0
        %718 = vmatprep.mubr.bf16.mxu0 0
        %719 = vmatmul.mubr.bf16.gmra.mrb[0].mxu0 %v500
        %v720 = vpop.f32.mrb[0].mxu0
        %v721 = vadd.f32 0.0, %v720
        %v722 = vpop.f32.mrb[0].mxu0
        %v723 = vpop.f32.mrb[0].mxu0
        %v724 = vadd.f32 0.0, %v723
        %v725 = vpop.f32.mrb[0].mxu0
        %726 = vmatprep.mubr.bf16.mxu0 0
        %727 = vmatmul.mubr.bf16.gmra.mrb[0].mxu0 %v503
        %v728 = vpop.f32.mrb[0].mxu0
        %v729 = vadd.f32 0.0, %v728
        %v730 = vpop.f32.mrb[0].mxu0
        %v731 = vpop.f32.mrb[0].mxu0
        %v732 = vadd.f32 0.0, %v731
        %v733 = vpop.f32.mrb[0].mxu0
        %734 = vmatprep.mubr.bf16.mxu0 0
        %735 = vmatmul.mubr.bf16.gmra.mrb[0].mxu0 %v506
        %v736 = vpop.f32.mrb[0].mxu0
        %v737 = vadd.f32 0.0, %v736
        %v738 = vpop.f32.mrb[0].mxu0
        %v739 = vpop.f32.mrb[0].mxu0
        %v740 = vadd.f32 0.0, %v739
        %v741 = vpop.f32.mrb[0].mxu0
        %742 = vmatprep.mubr.bf16.mxu0 0
        %743 = vmatmul.mubr.bf16.gmra.mrb[0].mxu0 %v509
        %v744 = vpop.f32.mrb[0].mxu0
        %v745 = vadd.f32 0.0, %v744
        %v746 = vpop.f32.mrb[0].mxu0
        %v747 = vpop.f32.mrb[0].mxu0
        %v748 = vadd.f32 0.0, %v747
        %v749 = vpop.f32.mrb[0].mxu0
        %750 = vmatprep.mubr.bf16.mxu0 0
        %751 = vmatmul.mubr.bf16.gmra.mrb[0].mxu0 %v512
        %v752 = vpop.f32.mrb[0].mxu0
        %v753 = vadd.f32 0.0, %v752
        %v754 = vpop.f32.mrb[0].mxu0
        %v755 = vpop.f32.mrb[0].mxu0
        %v756 = vpop.f32.mrb[0].mxu0
        %757 = vdwg.mxu0
        %v809 = vunpack.c.l.b16 %v201
        %v810 = vunpack.c.l.b16 %v202
        %v811 = vunpack.c.l.b16 %v203
        %v812 = vunpack.c.l.b16 %v204
        %v813 = vunpack.c.l.b16 %v205
        %v814 = vunpack.c.l.b16 %v206
        %v815 = vunpack.c.l.b16 %v207
        %v816 = vunpack.c.l.b16 %v208
        %v817 = vunpack.c.l.b16 %v209
        %v818 = vunpack.c.l.b16 %v210
        %v819 = vunpack.c.l.b16 %v211
        %v820 = vunpack.c.l.b16 %v212
        %v821 = vunpack.c.l.b16 %v213
        %v822 = vunpack.c.l.b16 %v214
        %v823 = vunpack.c.l.b16 %v215
        %v824 = vunpack.c.l.b16 %v216
        %v825 = vunpack.c.l.b16 %v217
        %v826 = vunpack.c.l.b16 %v218
        %v827 = vunpack.c.l.b16 %v219
        %v828 = vunpack.c.l.b16 %v220
        %v829 = vunpack.c.l.b16 %v221
        %v830 = vunpack.c.l.b16 %v222
        %v831 = vunpack.c.l.b16 %v223
        %v832 = vunpack.c.l.b16 %v224
        %v833 = vunpack.c.l.b16 %v225
        %v834 = vunpack.c.l.b16 %v226
        %v835 = vunpack.c.l.b16 %v227
        %v836 = vunpack.c.l.b16 %v228
        %v837 = vunpack.c.l.b16 %v229
        %v838 = vunpack.c.l.b16 %v230
        %v839 = vunpack.c.l.b16 %v231
        %v840 = vunpack.c.l.b16 %v232
        %v841 = vunpack.c.l.b16 %v233
        %v842 = vunpack.c.l.b16 %v234
        %v843 = vunpack.c.l.b16 %v235
        %v844 = vunpack.c.l.b16 %v236
        %v845 = vunpack.c.l.b16 %v237
        %v846 = vunpack.c.l.b16 %v238
        %v847 = vunpack.c.l.b16 %v239
        %v848 = vunpack.c.l.b16 %v240
        %v849 = vunpack.c.l.b16 %v241
        %v850 = vunpack.c.l.b16 %v242
        %v851 = vunpack.c.l.b16 %v243
        %v852 = vunpack.c.l.b16 %v244
        %v853 = vunpack.c.l.b16 %v245
        %v854 = vunpack.c.l.b16 %v246
        %v855 = vunpack.c.l.b16 %v247
        %v856 = vunpack.c.l.b16 %v248
        %v857 = vunpack.c.l.b16 %v249
        %v858 = vunpack.c.l.b16 %v250
        %v859 = vunpack.c.l.b16 %v251
        %v860 = vpack.c.b16 %v810, %v809
        %v861 = vpack.c.b16 %v812, %v811
        %v862 = vpack.c.b16 %v814, %v813
        %v863 = vpack.c.b16 %v816, %v815
        %v864 = vpack.c.b16 %v818, %v817
        %v865 = vpack.c.b16 %v820, %v819
        %v866 = vpack.c.b16 %v822, %v821
        %v867 = vpack.c.b16 %v824, %v823
        %v868 = vpack.c.b16 %v826, %v825
        %v869 = vpack.c.b16 %v828, %v827
        %v870 = vpack.c.b16 %v830, %v829
        %v871 = vpack.c.b16 %v832, %v831
        %v872 = vpack.c.b16 %v834, %v833
        %v873 = vpack.c.b16 %v836, %v835
        %v874 = vpack.c.b16 %v838, %v837
        %v875 = vpack.c.b16 %v840, %v839
        %v876 = vpack.c.b16 %v842, %v841
        %v877 = vpack.c.b16 %v844, %v843
        %v878 = vpack.c.b16 %v846, %v845
        %v879 = vpack.c.b16 %v848, %v847
        %v880 = vpack.c.b16 %v850, %v849
        %v881 = vpack.c.b16 %v852, %v851
        %v882 = vpack.c.b16 %v854, %v853
        %v883 = vpack.c.b16 %v856, %v855
        %v884 = vpack.c.b16 %v858, %v857
        %v885 = vpack.c.b16 %v859, %v859
        %v887 = vsel %vm435, %v860, 0
        %v890 = vsel %vm435, %v861, 0
        %v893 = vsel %vm435, %v862, 0
        %v896 = vsel %vm435, %v863, 0
        %v899 = vsel %vm435, %v864, 0
        %v902 = vsel %vm435, %v865, 0
        %v905 = vsel %vm435, %v866, 0
        %v908 = vsel %vm435, %v867, 0
        %v911 = vsel %vm435, %v868, 0
        %v914 = vsel %vm435, %v869, 0
        %v917 = vsel %vm435, %v870, 0
        %v920 = vsel %vm435, %v871, 0
        %v923 = vsel %vm435, %v872, 0
        %v926 = vsel %vm435, %v873, 0
        %v929 = vsel %vm435, %v874, 0
        %v932 = vsel %vm435, %v875, 0
        %v935 = vsel %vm435, %v876, 0
        %v938 = vsel %vm435, %v877, 0
        %v941 = vsel %vm435, %v878, 0
        %v944 = vsel %vm435, %v879, 0
        %v947 = vsel %vm435, %v880, 0
        %v950 = vsel %vm435, %v881, 0
        %v953 = vsel %vm435, %v882, 0
        %v956 = vsel %vm435, %v883, 0
        %v959 = vsel %vm435, %v884, 0
        %v962 = vsel %vm435, %v885, 0
        %v965 = vsel %vm514, %v252, 0
        %967 = vmatprep.subr.bf16.mxu0 0
        %968 = vmatpush1.bf16.msra.mxu0 %v965
        %969 = vmatprep.subr.bf16.mxu0 0
        %970 = vmatpush1.bf16.msra.mxu0 0
        %971 = vmatprep.subr.bf16.mxu0 0
        %972 = vmatpush1.bf16.msra.mxu0 0
        %973 = vmatprep.subr.bf16.mxu0 0
        %974 = vmatpush1.bf16.msra.mxu0 0
        %975 = vmatprep.subr.bf16.mxu0 0
        %976 = vmatpush1.bf16.msra.mxu0 0
        %977 = vmatprep.subr.bf16.mxu0 0
        %978 = vmatpush1.bf16.msra.mxu0 0
        %979 = vmatprep.subr.bf16.mxu0 0
        %980 = vmatpush1.bf16.msra.mxu0 0
        %981 = vmatprep.subr.bf16.mxu0 0
        %982 = vmatpush1.bf16.msra.mxu0 0
        %983 = vmatprep.subr.bf16.mxu0 0
        %984 = vmatpush1.bf16.msra.mxu0 0
        %985 = vmatprep.subr.bf16.mxu0 0
        %986 = vmatpush1.bf16.msra.mxu0 0
        %987 = vmatprep.subr.bf16.mxu0 0
        %988 = vmatpush1.bf16.msra.mxu0 0
        %989 = vmatprep.subr.bf16.mxu0 0
        %990 = vmatpush1.bf16.msra.mxu0 0
        %991 = vmatprep.subr.bf16.mxu0 0
        %992 = vmatpush1.bf16.msra.mxu0 0
        %993 = vmatprep.subr.bf16.mxu0 0
        %994 = vmatpush1.bf16.msra.mxu0 0
        %995 = vmatprep.subr.bf16.mxu0 0
        %996 = vmatpush1.bf16.msra.mxu0 0
        %997 = vmatprep.subr.bf16.mxu0 0
        %998 = vmatpush1.bf16.msra.mxu0 0
        %999 = vmatprep.mubr.bf16.mxu0 0
        %1000 = vmatmul.mubr.bf16.gmra.mrb[0].mxu0 %v887
        %v1001 = vpop.f32.mrb[0].mxu0
        %v1002 = vadd.f32 %v553, %v1001
        %v1003 = vpop.f32.mrb[0].mxu0
        %v1004 = vpop.f32.mrb[0].mxu0
        %v1005 = vadd.f32 %v556, %v1004
        %v1006 = vpop.f32.mrb[0].mxu0
        %1007 = vmatprep.mubr.bf16.mxu0 0
        %1008 = vmatmul.mubr.bf16.gmra.mrb[0].mxu0 %v890
        %v1009 = vpop.f32.mrb[0].mxu0
        %v1010 = vadd.f32 %v561, %v1009
        %v1011 = vpop.f32.mrb[0].mxu0
        %v1012 = vpop.f32.mrb[0].mxu0
        %v1013 = vadd.f32 %v564, %v1012
        %v1014 = vpop.f32.mrb[0].mxu0
        %1015 = vmatprep.mubr.bf16.mxu0 0
        %1016 = vmatmul.mubr.bf16.gmra.mrb[0].mxu0 %v893
        %v1017 = vpop.f32.mrb[0].mxu0
        %v1018 = vadd.f32 %v569, %v1017
        %v1019 = vpop.f32.mrb[0].mxu0
        %v1020 = vpop.f32.mrb[0].mxu0
        %v1021 = vadd.f32 %v572, %v1020
        %v1022 = vpop.f32.mrb[0].mxu0
        %1023 = vmatprep.mubr.bf16.mxu0 0
        %1024 = vmatmul.mubr.bf16.gmra.mrb[0].mxu0 %v896
        %v1025 = vpop.f32.mrb[0].mxu0
        %v1026 = vadd.f32 %v577, %v1025
        %v1027 = vpop.f32.mrb[0].mxu0
        %v1028 = vpop.f32.mrb[0].mxu0
        %v1029 = vadd.f32 %v580, %v1028
        %v1030 = vpop.f32.mrb[0].mxu0
        %1031 = vmatprep.mubr.bf16.mxu0 0
        %1032 = vmatmul.mubr.bf16.gmra.mrb[0].mxu0 %v899
        %v1033 = vpop.f32.mrb[0].mxu0
        %v1034 = vadd.f32 %v585, %v1033
        %v1035 = vpop.f32.mrb[0].mxu0
        %v1036 = vpop.f32.mrb[0].mxu0
        %v1037 = vadd.f32 %v588, %v1036
        %v1038 = vpop.f32.mrb[0].mxu0
        %1039 = vmatprep.mubr.bf16.mxu0 0
        %1040 = vmatmul.mubr.bf16.gmra.mrb[0].mxu0 %v902
        %v1041 = vpop.f32.mrb[0].mxu0
        %v1042 = vadd.f32 %v593, %v1041
        %v1043 = vpop.f32.mrb[0].mxu0
        %v1044 = vpop.f32.mrb[0].mxu0
        %v1045 = vadd.f32 %v596, %v1044
        %v1046 = vpop.f32.mrb[0].mxu0
        %1047 = vmatprep.mubr.bf16.mxu0 0
        %1048 = vmatmul.mubr.bf16.gmra.mrb[0].mxu0 %v905
        %v1049 = vpop.f32.mrb[0].mxu0
        %v1050 = vadd.f32 %v601, %v1049
        %v1051 = vpop.f32.mrb[0].mxu0
        %v1052 = vpop.f32.mrb[0].mxu0
        %v1053 = vadd.f32 %v604, %v1052
        %v1054 = vpop.f32.mrb[0].mxu0
        %1055 = vmatprep.mubr.bf16.mxu0 0
        %1056 = vmatmul.mubr.bf16.gmra.mrb[0].mxu0 %v908
        %v1057 = vpop.f32.mrb[0].mxu0
        %v1058 = vadd.f32 %v609, %v1057
        %v1059 = vpop.f32.mrb[0].mxu0
        %v1060 = vpop.f32.mrb[0].mxu0
        %v1061 = vadd.f32 %v612, %v1060
        %v1062 = vpop.f32.mrb[0].mxu0
        %1063 = vmatprep.mubr.bf16.mxu0 0
        %1064 = vmatmul.mubr.bf16.gmra.mrb[0].mxu0 %v911
        %v1065 = vpop.f32.mrb[0].mxu0
        %v1066 = vadd.f32 %v617, %v1065
        %v1067 = vpop.f32.mrb[0].mxu0
        %v1068 = vpop.f32.mrb[0].mxu0
        %v1069 = vadd.f32 %v620, %v1068
        %v1070 = vpop.f32.mrb[0].mxu0
        %1071 = vmatprep.mubr.bf16.mxu0 0
        %1072 = vmatmul.mubr.bf16.gmra.mrb[0].mxu0 %v914
        %v1073 = vpop.f32.mrb[0].mxu0
        %v1074 = vadd.f32 %v625, %v1073
        %v1075 = vpop.f32.mrb[0].mxu0
        %v1076 = vpop.f32.mrb[0].mxu0
        %v1077 = vadd.f32 %v628, %v1076
        %v1078 = vpop.f32.mrb[0].mxu0
        %1079 = vmatprep.mubr.bf16.mxu0 0
        %1080 = vmatmul.mubr.bf16.gmra.mrb[0].mxu0 %v917
        %v1081 = vpop.f32.mrb[0].mxu0
        %v1082 = vadd.f32 %v633, %v1081
        %v1083 = vpop.f32.mrb[0].mxu0
        %v1084 = vpop.f32.mrb[0].mxu0
        %v1085 = vadd.f32 %v636, %v1084
        %v1086 = vpop.f32.mrb[0].mxu0
        %1087 = vmatprep.mubr.bf16.mxu0 0
        %1088 = vmatmul.mubr.bf16.gmra.mrb[0].mxu0 %v920
        %v1089 = vpop.f32.mrb[0].mxu0
        %v1090 = vadd.f32 %v641, %v1089
        %v1091 = vpop.f32.mrb[0].mxu0
        %v1092 = vpop.f32.mrb[0].mxu0
        %v1093 = vadd.f32 %v644, %v1092
        %v1094 = vpop.f32.mrb[0].mxu0
        %1095 = vmatprep.mubr.bf16.mxu0 0
        %1096 = vmatmul.mubr.bf16.gmra.mrb[0].mxu0 %v923
        %v1097 = vpop.f32.mrb[0].mxu0
        %v1098 = vadd.f32 %v649, %v1097
        %v1099 = vpop.f32.mrb[0].mxu0
        %v1100 = vpop.f32.mrb[0].mxu0
        %v1101 = vadd.f32 %v652, %v1100
        %v1102 = vpop.f32.mrb[0].mxu0
        %1103 = vmatprep.mubr.bf16.mxu0 0
        %1104 = vmatmul.mubr.bf16.gmra.mrb[0].mxu0 %v926
        %v1105 = vpop.f32.mrb[0].mxu0
        %v1106 = vadd.f32 %v657, %v1105
        %v1107 = vpop.f32.mrb[0].mxu0
        %v1108 = vpop.f32.mrb[0].mxu0
        %v1109 = vadd.f32 %v660, %v1108
        %v1110 = vpop.f32.mrb[0].mxu0
        %1111 = vmatprep.mubr.bf16.mxu0 0
        %1112 = vmatmul.mubr.bf16.gmra.mrb[0].mxu0 %v929
        %v1113 = vpop.f32.mrb[0].mxu0
        %v1114 = vadd.f32 %v665, %v1113
        %v1115 = vpop.f32.mrb[0].mxu0
        %v1116 = vpop.f32.mrb[0].mxu0
        %v1117 = vadd.f32 %v668, %v1116
        %v1118 = vpop.f32.mrb[0].mxu0
        %1119 = vmatprep.mubr.bf16.mxu0 0
        %1120 = vmatmul.mubr.bf16.gmra.mrb[0].mxu0 %v932
        %v1121 = vpop.f32.mrb[0].mxu0
        %v1122 = vadd.f32 %v673, %v1121
        %v1123 = vpop.f32.mrb[0].mxu0
        %v1124 = vpop.f32.mrb[0].mxu0
        %v1125 = vadd.f32 %v676, %v1124
        %v1126 = vpop.f32.mrb[0].mxu0
        %1127 = vmatprep.mubr.bf16.mxu0 0
        %1128 = vmatmul.mubr.bf16.gmra.mrb[0].mxu0 %v935
        %v1129 = vpop.f32.mrb[0].mxu0
        %v1130 = vadd.f32 %v681, %v1129
        %v1131 = vpop.f32.mrb[0].mxu0
        %v1132 = vpop.f32.mrb[0].mxu0
        %v1133 = vadd.f32 %v684, %v1132
        %v1134 = vpop.f32.mrb[0].mxu0
        %1135 = vmatprep.mubr.bf16.mxu0 0
        %1136 = vmatmul.mubr.bf16.gmra.mrb[0].mxu0 %v938
        %v1137 = vpop.f32.mrb[0].mxu0
        %v1138 = vadd.f32 %v689, %v1137
        %v1139 = vpop.f32.mrb[0].mxu0
        %v1140 = vpop.f32.mrb[0].mxu0
        %v1141 = vadd.f32 %v692, %v1140
        %v1142 = vpop.f32.mrb[0].mxu0
        %1143 = vmatprep.mubr.bf16.mxu0 0
        %1144 = vmatmul.mubr.bf16.gmra.mrb[0].mxu0 %v941
        %v1145 = vpop.f32.mrb[0].mxu0
        %v1146 = vadd.f32 %v697, %v1145
        %v1147 = vpop.f32.mrb[0].mxu0
        %v1148 = vpop.f32.mrb[0].mxu0
        %v1149 = vadd.f32 %v700, %v1148
        %v1150 = vpop.f32.mrb[0].mxu0
        %1151 = vmatprep.mubr.bf16.mxu0 0
        %1152 = vmatmul.mubr.bf16.gmra.mrb[0].mxu0 %v944
        %v1153 = vpop.f32.mrb[0].mxu0
        %v1154 = vadd.f32 %v705, %v1153
        %v1155 = vpop.f32.mrb[0].mxu0
        %v1156 = vpop.f32.mrb[0].mxu0
        %v1157 = vadd.f32 %v708, %v1156
        %v1158 = vpop.f32.mrb[0].mxu0
        %1159 = vmatprep.mubr.bf16.mxu0 0
        %1160 = vmatmul.mubr.bf16.gmra.mrb[0].mxu0 %v947
        %v1161 = vpop.f32.mrb[0].mxu0
        %v1162 = vadd.f32 %v713, %v1161
        %v1163 = vpop.f32.mrb[0].mxu0
        %v1164 = vpop.f32.mrb[0].mxu0
        %v1165 = vadd.f32 %v716, %v1164
        %v1166 = vpop.f32.mrb[0].mxu0
        %1167 = vmatprep.mubr.bf16.mxu0 0
        %1168 = vmatmul.mubr.bf16.gmra.mrb[0].mxu0 %v950
        %v1169 = vpop.f32.mrb[0].mxu0
        %v1170 = vadd.f32 %v721, %v1169
        %v1171 = vpop.f32.mrb[0].mxu0
        %v1172 = vpop.f32.mrb[0].mxu0
        %v1173 = vadd.f32 %v724, %v1172
        %v1174 = vpop.f32.mrb[0].mxu0
        %1175 = vmatprep.mubr.bf16.mxu0 0
        %1176 = vmatmul.mubr.bf16.gmra.mrb[0].mxu0 %v953
        %v1177 = vpop.f32.mrb[0].mxu0
        %v1178 = vadd.f32 %v729, %v1177
        %v1179 = vpop.f32.mrb[0].mxu0
        %v1180 = vpop.f32.mrb[0].mxu0
        %v1181 = vadd.f32 %v732, %v1180
        %v1182 = vpop.f32.mrb[0].mxu0
        %1183 = vmatprep.mubr.bf16.mxu0 0
        %1184 = vmatmul.mubr.bf16.gmra.mrb[0].mxu0 %v956
        %v1185 = vpop.f32.mrb[0].mxu0
        %v1186 = vadd.f32 %v737, %v1185
        %v1187 = vpop.f32.mrb[0].mxu0
        %v1188 = vpop.f32.mrb[0].mxu0
        %v1189 = vadd.f32 %v740, %v1188
        %v1190 = vpop.f32.mrb[0].mxu0
        %1191 = vmatprep.mubr.bf16.mxu0 0
        %1192 = vmatmul.mubr.bf16.gmra.mrb[0].mxu0 %v959
        %v1193 = vpop.f32.mrb[0].mxu0
        %v1194 = vadd.f32 %v745, %v1193
        %v1195 = vpop.f32.mrb[0].mxu0
        %v1196 = vpop.f32.mrb[0].mxu0
        %v1197 = vadd.f32 %v748, %v1196
        %v1198 = vpop.f32.mrb[0].mxu0
        %1199 = vmatprep.mubr.bf16.mxu0 0
        %1200 = vmatmul.mubr.bf16.gmra.mrb[0].mxu0 %v962
        %v1201 = vpop.f32.mrb[0].mxu0
        %v1202 = vadd.f32 %v753, %v1201
        %v1203 = vpop.f32.mrb[0].mxu0
        %v1204 = vpop.f32.mrb[0].mxu0
        %v1205 = vpop.f32.mrb[0].mxu0
        %1206 = vdwg.mxu0
        %v1207 = vld [vmem:[%s2] sm:$0x1]
        %v1209 = vlaneseq
        %v1210 = vshrl.u32 %v1209, 7
        %v1211 = vsub.s32 0, %v1210
        %v1212 = vrot.slane %v1207, %v1211
        %v1214 = vadd.f32 %v1002, %v1212
        %v1215 = vadd.f32 %v1005, %v1212
        %v1216 = vadd.f32 %v1010, %v1212
        %v1217 = vadd.f32 %v1013, %v1212
        %v1218 = vadd.f32 %v1018, %v1212
        %v1219 = vadd.f32 %v1021, %v1212
        %v1220 = vadd.f32 %v1026, %v1212
        %v1221 = vadd.f32 %v1029, %v1212
        %v1222 = vadd.f32 %v1034, %v1212
        %v1223 = vadd.f32 %v1037, %v1212
        %v1224 = vadd.f32 %v1042, %v1212
        %v1225 = vadd.f32 %v1045, %v1212
        %v1226 = vadd.f32 %v1050, %v1212
        %v1227 = vadd.f32 %v1053, %v1212
        %v1228 = vadd.f32 %v1058, %v1212
        %v1229 = vadd.f32 %v1061, %v1212
        %v1230 = vadd.f32 %v1066, %v1212
        %v1231 = vadd.f32 %v1069, %v1212
        %v1232 = vadd.f32 %v1074, %v1212
        %v1233 = vadd.f32 %v1077, %v1212
        %v1234 = vadd.f32 %v1082, %v1212
        %v1235 = vadd.f32 %v1085, %v1212
        %v1236 = vadd.f32 %v1090, %v1212
        %v1237 = vadd.f32 %v1093, %v1212
        %v1238 = vadd.f32 %v1098, %v1212
        %v1239 = vadd.f32 %v1101, %v1212
        %v1240 = vadd.f32 %v1106, %v1212
        %v1241 = vadd.f32 %v1109, %v1212
        %v1242 = vadd.f32 %v1114, %v1212
        %v1243 = vadd.f32 %v1117, %v1212
        %v1244 = vadd.f32 %v1122, %v1212
        %v1245 = vadd.f32 %v1125, %v1212
        %v1246 = vadd.f32 %v1130, %v1212
        %v1247 = vadd.f32 %v1133, %v1212
        %v1248 = vadd.f32 %v1138, %v1212
        %v1249 = vadd.f32 %v1141, %v1212
        %v1250 = vadd.f32 %v1146, %v1212
        %v1251 = vadd.f32 %v1149, %v1212
        %v1252 = vadd.f32 %v1154, %v1212
        %v1253 = vadd.f32 %v1157, %v1212
        %v1254 = vadd.f32 %v1162, %v1212
        %v1255 = vadd.f32 %v1165, %v1212
        %v1256 = vadd.f32 %v1170, %v1212
        %v1257 = vadd.f32 %v1173, %v1212
        %v1258 = vadd.f32 %v1178, %v1212
        %v1259 = vadd.f32 %v1181, %v1212
        %v1260 = vadd.f32 %v1186, %v1212
        %v1261 = vadd.f32 %v1189, %v1212
        %v1262 = vadd.f32 %v1194, %v1212
        %v1263 = vadd.f32 %v1197, %v1212
        %v1264 = vadd.f32 %v1202, %v1212
        %v1265 = vpack.c.bf16 %v1215, %v1214
        %v1266 = vpack.c.bf16 %v1216, %v1216
        %v1267 = vpack.c.bf16 %v1218, %v1217
        %v1268 = vpack.c.bf16 %v1219, %v1219
        %v1269 = vpack.c.bf16 %v1221, %v1220
        %v1270 = vpack.c.bf16 %v1222, %v1222
        %v1271 = vpack.c.bf16 %v1224, %v1223
        %v1272 = vpack.c.bf16 %v1225, %v1225
        %v1273 = vpack.c.bf16 %v1227, %v1226
        %v1274 = vpack.c.bf16 %v1228, %v1228
        %v1275 = vpack.c.bf16 %v1230, %v1229
        %v1276 = vpack.c.bf16 %v1231, %v1231
        %v1277 = vpack.c.bf16 %v1233, %v1232
        %v1278 = vpack.c.bf16 %v1234, %v1234
        %v1279 = vpack.c.bf16 %v1236, %v1235
        %v1280 = vpack.c.bf16 %v1237, %v1237
        %v1281 = vpack.c.bf16 %v1239, %v1238
        %v1282 = vpack.c.bf16 %v1240, %v1240
        %v1283 = vpack.c.bf16 %v1242, %v1241
        %v1284 = vpack.c.bf16 %v1243, %v1243
        %v1285 = vpack.c.bf16 %v1245, %v1244
        %v1286 = vpack.c.bf16 %v1246, %v1246
        %v1287 = vpack.c.bf16 %v1248, %v1247
        %v1288 = vpack.c.bf16 %v1249, %v1249
        %v1289 = vpack.c.bf16 %v1251, %v1250
        %v1290 = vpack.c.bf16 %v1252, %v1252
        %v1291 = vpack.c.bf16 %v1254, %v1253
        %v1292 = vpack.c.bf16 %v1255, %v1255
        %v1293 = vpack.c.bf16 %v1257, %v1256
        %v1294 = vpack.c.bf16 %v1258, %v1258
        %v1295 = vpack.c.bf16 %v1260, %v1259
        %v1296 = vpack.c.bf16 %v1261, %v1261
        %v1297 = vpack.c.bf16 %v1263, %v1262
        %v1298 = vpack.c.bf16 %v1264, %v1264
        %v1333 = vunpack.c.l.b16 %v1265
        %v1334 = vunpack.c.h.b16 %v1265
        %v1335 = vunpack.c.l.b16 %v1266
        %v1336 = vunpack.c.l.b16 %v1267
        %v1337 = vunpack.c.h.b16 %v1267
        %v1338 = vunpack.c.l.b16 %v1268
        %v1339 = vunpack.c.l.b16 %v1269
        %v1340 = vunpack.c.h.b16 %v1269
        %v1341 = vunpack.c.l.b16 %v1270
        %v1342 = vunpack.c.l.b16 %v1271
        %v1343 = vunpack.c.h.b16 %v1271
        %v1344 = vunpack.c.l.b16 %v1272
        %v1345 = vunpack.c.l.b16 %v1273
        %v1346 = vunpack.c.h.b16 %v1273
        %v1347 = vunpack.c.l.b16 %v1274
        %v1348 = vunpack.c.l.b16 %v1275
        %v1349 = vunpack.c.h.b16 %v1275
        %v1350 = vunpack.c.l.b16 %v1276
        %v1351 = vunpack.c.l.b16 %v1277
        %v1352 = vunpack.c.h.b16 %v1277
        %v1353 = vunpack.c.l.b16 %v1278
        %v1354 = vunpack.c.l.b16 %v1279
        %v1355 = vunpack.c.h.b16 %v1279
        %v1356 = vunpack.c.l.b16 %v1280
        %v1357 = vunpack.c.l.b16 %v1281
        %v1358 = vunpack.c.h.b16 %v1281
        %v1359 = vunpack.c.l.b16 %v1282
        %v1360 = vunpack.c.l.b16 %v1283
        %v1361 = vunpack.c.h.b16 %v1283
        %v1362 = vunpack.c.l.b16 %v1284
        %v1363 = vunpack.c.l.b16 %v1285
        %v1364 = vunpack.c.h.b16 %v1285
        %v1365 = vunpack.c.l.b16 %v1286
        %v1366 = vunpack.c.l.b16 %v1287
        %v1367 = vunpack.c.h.b16 %v1287
        %v1368 = vunpack.c.l.b16 %v1288
        %v1369 = vunpack.c.l.b16 %v1289
        %v1370 = vunpack.c.h.b16 %v1289
        %v1371 = vunpack.c.l.b16 %v1290
        %v1372 = vunpack.c.l.b16 %v1291
        %v1373 = vunpack.c.h.b16 %v1291
        %v1374 = vunpack.c.l.b16 %v1292
        %v1375 = vunpack.c.l.b16 %v1293
        %v1376 = vunpack.c.h.b16 %v1293
        %v1377 = vunpack.c.l.b16 %v1294
        %v1378 = vunpack.c.l.b16 %v1295
        %v1379 = vunpack.c.h.b16 %v1295
        %v1380 = vunpack.c.l.b16 %v1296
        %v1381 = vunpack.c.l.b16 %v1297
        %v1382 = vunpack.c.h.b16 %v1297
        %v1383 = vunpack.c.l.b16 %v1298
        %v1384 = vpack.c.b16 %v1333, %v1333
        %v1385 = vpack.c.b16 %v1334, %v1334
        %v1386 = vpack.c.b16 %v1335, %v1335
        %v1387 = vpack.c.b16 %v1336, %v1336
        %v1388 = vpack.c.b16 %v1337, %v1337
        %v1389 = vpack.c.b16 %v1338, %v1338
        %v1390 = vpack.c.b16 %v1339, %v1339
        %v1391 = vpack.c.b16 %v1340, %v1340
        %v1392 = vpack.c.b16 %v1341, %v1341
        %v1393 = vpack.c.b16 %v1342, %v1342
        %v1394 = vpack.c.b16 %v1343, %v1343
        %v1395 = vpack.c.b16 %v1344, %v1344
        %v1396 = vpack.c.b16 %v1345, %v1345
        %v1397 = vpack.c.b16 %v1346, %v1346
        %v1398 = vpack.c.b16 %v1347, %v1347
        %v1399 = vpack.c.b16 %v1348, %v1348
        %v1400 = vpack.c.b16 %v1349, %v1349
        %v1401 = vpack.c.b16 %v1350, %v1350
        %v1402 = vpack.c.b16 %v1351, %v1351
        %v1403 = vpack.c.b16 %v1352, %v1352
        %v1404 = vpack.c.b16 %v1353, %v1353
        %v1405 = vpack.c.b16 %v1354, %v1354
        %v1406 = vpack.c.b16 %v1355, %v1355
        %v1407 = vpack.c.b16 %v1356, %v1356
        %v1408 = vpack.c.b16 %v1357, %v1357
        %v1409 = vpack.c.b16 %v1358, %v1358
        %v1410 = vpack.c.b16 %v1359, %v1359
        %v1411 = vpack.c.b16 %v1360, %v1360
        %v1412 = vpack.c.b16 %v1361, %v1361
        %v1413 = vpack.c.b16 %v1362, %v1362
        %v1414 = vpack.c.b16 %v1363, %v1363
        %v1415 = vpack.c.b16 %v1364, %v1364
        %v1416 = vpack.c.b16 %v1365, %v1365
        %v1417 = vpack.c.b16 %v1366, %v1366
        %v1418 = vpack.c.b16 %v1367, %v1367
        %v1419 = vpack.c.b16 %v1368, %v1368
        %v1420 = vpack.c.b16 %v1369, %v1369
        %v1421 = vpack.c.b16 %v1370, %v1370
        %v1422 = vpack.c.b16 %v1371, %v1371
        %v1423 = vpack.c.b16 %v1372, %v1372
        %v1424 = vpack.c.b16 %v1373, %v1373
        %v1425 = vpack.c.b16 %v1374, %v1374
        %v1426 = vpack.c.b16 %v1375, %v1375
        %v1427 = vpack.c.b16 %v1376, %v1376
        %v1428 = vpack.c.b16 %v1377, %v1377
        %v1429 = vpack.c.b16 %v1378, %v1378
        %v1430 = vpack.c.b16 %v1379, %v1379
        %v1431 = vpack.c.b16 %v1380, %v1380
        %v1432 = vpack.c.b16 %v1381, %v1381
        %v1433 = vpack.c.b16 %v1382, %v1382
        %v1434 = vpack.c.b16 %v1383, %v1383
        %1486 = vst [vmem:[%s188] sm:$0xf] %v1384
        %1487 = vst [vmem:[%s188 + $0x4] sm:$0xf] %v1385
        %1488 = vst [vmem:[%s188 + $0x8] sm:$0xf] %v1386
        %1489 = vst [vmem:[%s188 + $0xc] sm:$0xf] %v1387
        %1490 = vst [vmem:[%s188 + $0x10] sm:$0xf] %v1388
        %1491 = vst [vmem:[%s188 + $0x14] sm:$0xf] %v1389
        %1492 = vst [vmem:[%s188 + $0x18] sm:$0xf] %v1390
        %1493 = vst [vmem:[%s188 + $0x1c] sm:$0xf] %v1391
        %1494 = vst [vmem:[%s188 + $0x20] sm:$0xf] %v1392
        %1495 = vst [vmem:[%s188 + $0x24] sm:$0xf] %v1393
        %1496 = vst [vmem:[%s188 + $0x28] sm:$0xf] %v1394
        %1497 = vst [vmem:[%s188 + $0x2c] sm:$0xf] %v1395
        %1498 = vst [vmem:[%s188 + $0x30] sm:$0xf] %v1396
        %1499 = vst [vmem:[%s188 + $0x34] sm:$0xf] %v1397
        %1500 = vst [vmem:[%s188 + $0x38] sm:$0xf] %v1398
        %1501 = vst [vmem:[%s188 + $0x3c] sm:$0xf] %v1399
        %1502 = vst [vmem:[%s188 + $0x40] sm:$0xf] %v1400
        %1503 = vst [vmem:[%s188 + $0x44] sm:$0xf] %v1401
        %1504 = vst [vmem:[%s188 + $0x48] sm:$0xf] %v1402
        %1505 = vst [vmem:[%s188 + $0x4c] sm:$0xf] %v1403
        %1506 = vst [vmem:[%s188 + $0x50] sm:$0xf] %v1404
        %1507 = vst [vmem:[%s188 + $0x54] sm:$0xf] %v1405
        %1508 = vst [vmem:[%s188 + $0x58] sm:$0xf] %v1406
        %1509 = vst [vmem:[%s188 + $0x5c] sm:$0xf] %v1407
        %1510 = vst [vmem:[%s188 + $0x60] sm:$0xf] %v1408
        %1511 = vst [vmem:[%s188 + $0x64] sm:$0xf] %v1409
        %1512 = vst [vmem:[%s188 + $0x68] sm:$0xf] %v1410
        %1513 = vst [vmem:[%s188 + $0x6c] sm:$0xf] %v1411
        %1514 = vst [vmem:[%s188 + $0x70] sm:$0xf] %v1412
        %1515 = vst [vmem:[%s188 + $0x74] sm:$0xf] %v1413
        %1516 = vst [vmem:[%s188 + $0x78] sm:$0xf] %v1414
        %1517 = vst [vmem:[%s188 + $0x7c] sm:$0xf] %v1415
        %1518 = vst [vmem:[%s188 + $0x80] sm:$0xf] %v1416
        %1519 = vst [vmem:[%s188 + $0x84] sm:$0xf] %v1417
        %1520 = vst [vmem:[%s188 + $0x88] sm:$0xf] %v1418
        %1521 = vst [vmem:[%s188 + $0x8c] sm:$0xf] %v1419
        %1522 = vst [vmem:[%s188 + $0x90] sm:$0xf] %v1420
        %1523 = vst [vmem:[%s188 + $0x94] sm:$0xf] %v1421
        %1524 = vst [vmem:[%s188 + $0x98] sm:$0xf] %v1422
        %1525 = vst [vmem:[%s188 + $0x9c] sm:$0xf] %v1423
        %1526 = vst [vmem:[%s188 + $0xa0] sm:$0xf] %v1424
        %1527 = vst [vmem:[%s188 + $0xa4] sm:$0xf] %v1425
        %1528 = vst [vmem:[%s188 + $0xa8] sm:$0xf] %v1426
        %1529 = vst [vmem:[%s188 + $0xac] sm:$0xf] %v1427
        %1530 = vst [vmem:[%s188 + $0xb0] sm:$0xf] %v1428
        %1531 = vst [vmem:[%s188 + $0xb4] sm:$0xf] %v1429
        %1532 = vst [vmem:[%s188 + $0xb8] sm:$0xf] %v1430
        %1533 = vst [vmem:[%s188 + $0xbc] sm:$0xf] %v1431
        %1534 = vst [vmem:[%s188 + $0xc0] sm:$0xf] %v1432
        %1535 = vst [vmem:[%s188 + $0xc4] sm:$0xf] %v1433
        %1536 = vst [vmem:[%s188 + $0xc8] sm:$0xf] %v1434
        %s1537 = sand.u32 %s109, 1
        %s1538 = scalar_lea.sflag [#allocation3], %s1537
        %s1539 = sand.u32 %s109, 1
        %s1540 = smul.addr %s1539, 204
        %s1541 = scalar_lea.vmem [#allocation2], %s1540
        // Predicated region
        $region33: #{tpu_custom_call.1} parent=31 // pred_check
          %p1542 = pneg %p119
        $region34: #{tpu_custom_call.1} parent=31 // pred_check_branch
          %1544 = sbr.rel (%p1542) target = $region36
        $region35: #{tpu_custom_call.1} parent=31 // pred_region
          %s1545 = smul.u32 3, %s22
          %s1547 = ssub.s32 3264, 3264
          %1548 = vsyncadd %s1538, %s1547
          %s1549 = smul.addr %s21, 51
          %s1550 = sadd.s32 %s1545, %s1549
          %s1551 = smul.addr %s1550, 64
          %s1552 = scalar_lea.hbm %s3, %s1551
          %s1553 = sshll.u32 %s1541, 4
          %s1554 = int_to_ptr.vmem [resolvable:$true] %s1553
          %1559 = dma.vmem_to_hbm [thread:$0]  %s1554, 3264, %s1552, %s1538, 64, 64, 4
        $region36: #{tpu_custom_call.1} parent=31 // pred_fallthru
          _
      $region32: #{tpu_custom_call.1} parent=5 // pred_fallthru
        _
      %p1560 = scmp.le.s32.totalorder 2, %s12
      // Predicated region
      $region37: #{tpu_custom_call.1} parent=5 // pred_check
        %p1561 = pneg %p1560
      $region38: #{tpu_custom_call.1} parent=5 // pred_check_branch
        %1563 = sbr.rel (%p1561) target = $region40
      $region39: #{tpu_custom_call.1} parent=5 // pred_region
        %s1564 = ssub.s32 %s12, 2
        // Predicated region
        $region41: #{tpu_custom_call.1} parent=39 // pred_check
          %p1565 = pneg %p125
        $region42: #{tpu_custom_call.1} parent=39 // pred_check_branch
          %1567 = sbr.rel (%p1565) target = $region44
        $region43: #{tpu_custom_call.1} parent=39 // pred_region
          %s1568 = sand.u32 %s110, 1
          %s1569 = scalar_lea.sflag [#allocation3], %s1568
          %s1570 = sand.u32 %s110, 1
          %s1571 = smul.addr %s1570, 204
          %s1572 = scalar_lea.vmem [#allocation2], %s1571
          %1573 = dma.done %s1569, 3264
        $region44: #{tpu_custom_call.1} parent=39 // pred_fallthru
          _
      $region40: #{tpu_custom_call.1} parent=5 // pred_fallthru
        _
    $region6: #{tpu_custom_call.1} parent=1 // loop_footer
      %s16 = sadd.s32 1, %s12
    $region7: #{tpu_custom_call.1} parent=1 // loop_footer_branch
      %11 = sbr.rel target = $region3
    $region8: #{tpu_custom_call.1} parent=1 // loop_exit
      _
    %1574 = vsyncpa [#allocation3], 1
    %s1575 = scalar_lea.sflag [#allocation3], 1
    %1576 = vsyncpa %s1575, 1

</llo_original>
